<compile_context>
chip_gen: v7x
topology: tpu7x:2x2x1
jax: 0.10.0
libtpu: 0.0.40
codegen_flags: <defaults>
</compile_context>

<pallas_src>
import functools

import jax
import jax.numpy as jnp
import numpy as np
from jax.experimental import pallas as pl
from jax.experimental.pallas import tpu as pltpu

PAD_TOKEN_ID = 50256
MAX_TILE_S = 16  # cap -> at most 2*16 = 32 DMA semaphores for the double-buffered gather


def _pick_tile_s(S, max_tile=MAX_TILE_S):
    """Largest tile in {8, 16, ...} that adds no padding beyond the minimal 8-alignment pad."""
    min_pad = (-S) % 8
    best, t = 8, 16
    while t <= max_tile:
        if (-S) % t == min_pad:
            best = t
        t *= 2
    return best


def _soft_embed_kernel(n_tokens, tile_s,
                       tok_ref, start_ref,      # scalar prefetch (SMEM): (B, S_pad), (B,)
                       learned_ref, wte_hbm,    # inputs: (n_tokens, D) VMEM-resident, (V, D) HBM
                       out_ref,                 # output tile: (1, tile_s, D)
                       rows_vmem, sems):        # scratch: (2, tile_s, D) VMEM, (2, tile_s) DMA sems
    b = pl.program_id(0)
    st = pl.program_id(1)
    num_st = pl.num_programs(1)
    cur = st & 1
    nxt = 1 - cur
    start = start_ref[b]  # scalar read before any .wait()

    def issue_tile(tile_idx, slot):
        base = tile_idx * tile_s
        for i in range(tile_s):
            tok = tok_ref[b, base + i]
            pltpu.make_async_copy(
                wte_hbm.at[pl.ds(tok, 1), :],
                rows_vmem.at[slot, pl.ds(i, 1), :],
                sems.at[slot, i],
            ).start()

    # Prime the double-buffer at the first tile of every batch row.  Condition depends only on
    # the sequence-tile index, so it stays correct under megacore sharding of the batch axis.
    @pl.when(st == 0)
    def _():
        issue_tile(0, 0)

    # Prefetch the next tile's wte rows into the other slot *before* waiting on the current
    # ones: those DMAs proceed while we wait / select / store this tile, so the gather engine
    # never idles across grid steps.  The chain never crosses a batch-row boundary.
    @pl.when(st + 1 < num_st)
    def _():
        issue_tile(st + 1, nxt)

    # Wait for the current tile's row gathers.
    for i in range(tile_s):
        pltpu.make_async_copy(
            wte_hbm.at[pl.ds(0, 1), :],
            rows_vmem.at[cur, pl.ds(i, 1), :],
            sems.at[cur, i],
        ).wait()

    # Absolute sequence positions covered by this tile.
    pos = st * tile_s + jax.lax.broadcasted_iota(jnp.int32, (tile_s, 1), 0)
    rows = rows_vmem[cur]
    # Overwrite soft-prompt window positions with the VMEM-resident learned rows.  n_tokens is
    # small, so an exact static select chain (VPU, hidden under the DMAs) replaces any dynamic
    # gather — bit-exact fp32.
    for k in range(n_tokens):
        rows = jnp.where(pos == start + k, learned_ref[pl.ds(k, 1), :], rows)
    out_ref[...] = rows.reshape(out_ref.shape)


def soft_embedding_pallas(tokens, starts, wte, learned, n_tokens):
    B, S = tokens.shape
    V, D = wte.shape
    tile_s = _pick_tile_s(S)
    s_pad = ((S + tile_s - 1) // tile_s) * tile_s
    if s_pad != S:
        # Pad with token id 0 (always a valid row); padded positions are sliced off below.
        tokens = jnp.pad(tokens, ((0, 0), (0, s_pad - S)))
    num_tiles = s_pad // tile_s

    kernel = functools.partial(_soft_embed_kernel, n_tokens, tile_s)
    grid_spec = pltpu.PrefetchScalarGridSpec(
        num_scalar_prefetch=2,
        grid=(B, num_tiles),
        in_specs=[
            # learned table: constant block index -> DMA'd once, stays resident in VMEM.
            pl.BlockSpec((n_tokens, D), lambda b, st, tok, strt: (0, 0)),
            # wte stays in HBM; rows are gathered in-kernel with manual async copies.
            pl.BlockSpec(memory_space=pl.ANY),
        ],
        out_specs=pl.BlockSpec((1, tile_s, D), lambda b, st, tok, strt: (b, st, 0)),
        scratch_shapes=[
            pltpu.VMEM((2, tile_s, D), wte.dtype),     # double-buffered gathered rows
            pltpu.SemaphoreType.DMA((2, tile_s)),      # one DMA sem per row copy per slot
        ],
    )
    out = pl.pallas_call(
        kernel,
        grid_spec=grid_spec,
        out_shape=jax.ShapeDtypeStruct((B, s_pad, D), wte.dtype),
        compiler_params=pltpu.CompilerParams(
            # batch axis can shard across TensorCores; sequence-tile axis carries the
            # double-buffer prefetch chain, so it must run in order.
            dimension_semantics=("parallel", "arbitrary")
        ),
    )(tokens, starts, learned, wte)
    return out[:, :S, :]


def soft_embedding_forward(tokens, wte, learned, n_tokens=10, pad_id=PAD_TOKEN_ID):
    """JAX/Pallas equivalent of SoftEmbedding.forward (fully traceable / jittable)."""
    tokens = tokens.astype(jnp.int32)
    prompt_tokens = tokens[:, n_tokens:]
    # Traced equivalent of `if self.padding_token_id in prompt_tokens[:, 0]` — no host sync.
    has_pad = jnp.any(prompt_tokens[:, 0] == pad_id)
    starts_pad = jnp.argmin(
        (prompt_tokens == pad_id).astype(jnp.int32), axis=1
    ).astype(jnp.int32)
    starts = jnp.where(has_pad, starts_pad, jnp.zeros_like(starts_pad))
    out = soft_embedding_pallas(tokens, starts, wte, learned, n_tokens)
    assert out.shape[1] == prompt_tokens.shape[1] + n_tokens
    return out


def soft_embedding_reference(tokens, wte, learned, n_tokens=10, pad_id=PAD_TOKEN_ID):
    """NumPy reference, transliterated from the PyTorch forward."""
    tokens = np.asarray(tokens)
    wte = np.asarray(wte)
    learned = np.asarray(learned)
    prompt_tokens = tokens[:, n_tokens:]
    if pad_id in prompt_tokens[:, 0]:
        seq = wte[tokens].copy()
        starts = np.argmin((prompt_tokens == pad_id).astype(np.int32), axis=1)
        for b, s0 in enumerate(starts.tolist()):
            seq[b, s0: s0 + n_tokens] = learned
        return seq
    else:
        inp = wte[prompt_tokens]
        le = np.broadcast_to(learned[None], (tokens.shape[0],) + learned.shape)
        return np.concatenate([le, inp], axis=1)


# TODO(synk): the torch.equal debug assertion inside the padding branch of the original forward
# has no computational effect and is not reproduced in-kernel.

if __name__ == "__main__":
    key = jax.random.PRNGKey(0)
    B, S, n_tokens, D = 2, 18, 10, 128
    V = PAD_TOKEN_ID + 4  # vocab must contain the padding id (50256)

    k_wte, k_tok = jax.random.split(key)
    # Deterministic synthetic wte (nn.Embedding weight).
    wte = jax.random.normal(k_wte, (V, D), dtype=jnp.float32)
    # initialize_from_vocab=True -> learned_embedding = wte.weight[:n_tokens]
    learned = wte[:n_tokens]

    real = jax.random.randint(k_tok, (B, S), 0, 1000, dtype=jnp.int32)

    fwd = jax.jit(functools.partial(soft_embedding_forward, n_tokens=n_tokens))

    # Case 1: left-padded sequences -> padding-token branch of forward()
    tokens_pad = np.array(real)
    tokens_pad[0, :12] = PAD_TOKEN_ID  # 10 soft-prompt slots + 2 extra pads in the prompt
    tokens_pad[1, :10] = PAD_TOKEN_ID  # 10 soft-prompt slots, prompt starts immediately
    tokens_pad = jnp.asarray(tokens_pad, dtype=jnp.int32)

    out1 = jax.block_until_ready(fwd(tokens_pad, wte, learned))
    ref1 = soft_embedding_reference(tokens_pad, wte, learned, n_tokens)
    assert out1.shape == (B, S, D)
    np.testing.assert_allclose(np.asarray(out1), ref1, rtol=0, atol=0)

    # Case 2: no padding at prompt start -> concat(learned, wte(prompt_tokens)) branch
    tokens_nopad = jnp.asarray(np.array(real), dtype=jnp.int32)
    out2 = jax.block_until_ready(fwd(tokens_nopad, wte, learned))
    ref2 = soft_embedding_reference(tokens_nopad, wte, learned, n_tokens)
    np.testing.assert_allclose(np.asarray(out2), ref2, rtol=0, atol=0)

    print("KERNEL_OK")
</pallas_src>

<mosaic_0001>
module attributes {stable_mosaic.version = 11 : i64} {
  func.func @_soft_embed_kernel(%arg0: i32, %arg1: i32, %arg2: memref<2x24xi32, #tpu.memory_space<smem>>, %arg3: memref<2xi32, #tpu.memory_space<smem>>, %arg4: memref<10x128xf32, #tpu.memory_space<vmem>>, %arg5: memref<50260x128xf32, #tpu.memory_space<any>>, %arg6: memref<1x8x128xf32, #tpu.memory_space<vmem>>, %arg7: memref<2x8x128xf32, #tpu.memory_space<vmem>>, %arg8: memref<2x8x!tpu.dma_semaphore, #tpu.memory_space<semaphore_mem>>) attributes {dimension_semantics = [#tpu.dimension_semantics<parallel>, #tpu.dimension_semantics<arbitrary>], iteration_bounds = array<i64: 2, 3>, scalar_prefetch = 2 : i64, scratch_operands = 2 : i64, tpu.core_type = #tpu.core_type<tc>, window_params = [{pipeline_mode = #tpu.pipeline_mode<synchronous>, transform_indices = @transform_0, window_bounds = array<i64: 10, 128>}, {}, {transform_indices = @transform_2, window_bounds = array<i64: 1, 8, 128>}]} {
    %c1_i32 = arith.constant 1 : i32
    %0 = arith.andi %arg1, %c1_i32 : i32
    %c1_i32_0 = arith.constant 1 : i32
    %1 = arith.subi %c1_i32_0, %0 : i32
    %2 = arith.index_cast %arg0 : i32 to index
    %3 = memref.load %arg3[%2] : memref<2xi32, #tpu.memory_space<smem>>
    %c0_i32 = arith.constant 0 : i32
    %4 = arith.cmpi eq, %arg1, %c0_i32 : i32
    %5 = arith.extui %4 : i1 to i32
    %c0_i32_1 = arith.constant 0 : i32
    %6 = arith.cmpi ne, %5, %c0_i32_1 : i32
    scf.if %6 {
      %150 = arith.index_cast %arg0 : i32 to index
      %c0_63 = arith.constant 0 : index
      %151 = memref.load %arg2[%150, %c0_63] : memref<2x24xi32, #tpu.memory_space<smem>>
      %c0_i32_64 = arith.constant 0 : i32
      %c0_i32_65 = arith.constant 0 : i32
      %c0_i32_66 = arith.constant 0 : i32
      %c0_i32_67 = arith.constant 0 : i32
      %152 = tpu.memref_slice %arg5[%151, %c0_i32_67] : memref<50260x128xf32, #tpu.memory_space<any>> -> memref<1x128xf32, #tpu.memory_space<any>>
      %c0_i32_68 = arith.constant 0 : i32
      %c0_i32_69 = arith.constant 0 : i32
      %153 = tpu.memref_slice %arg7[%c0_i32_64, %c0_i32_68, %c0_i32_69] : memref<2x8x128xf32, #tpu.memory_space<vmem>> -> memref<1x1x128xf32, #tpu.memory_space<vmem>>
      %154 = tpu.memref_squeeze %153 : memref<1x1x128xf32, #tpu.memory_space<vmem>> -> memref<1x128xf32, #tpu.memory_space<vmem>>
      %155 = tpu.memref_slice %arg8[%c0_i32_65, %c0_i32_66] : memref<2x8x!tpu.dma_semaphore, #tpu.memory_space<semaphore_mem>> -> memref<1x1x!tpu.dma_semaphore, #tpu.memory_space<semaphore_mem>>
      %156 = tpu.memref_squeeze %155 : memref<1x1x!tpu.dma_semaphore, #tpu.memory_space<semaphore_mem>> -> memref<!tpu.dma_semaphore, #tpu.memory_space<semaphore_mem>>
      tpu.enqueue_dma source(%152 : memref<1x128xf32, #tpu.memory_space<any>>) target(%154 : memref<1x128xf32, #tpu.memory_space<vmem>>) target_semaphore(%156 : memref<!tpu.dma_semaphore, #tpu.memory_space<semaphore_mem>>)
      %157 = arith.index_cast %arg0 : i32 to index
      %c1_70 = arith.constant 1 : index
      %158 = memref.load %arg2[%157, %c1_70] : memref<2x24xi32, #tpu.memory_space<smem>>
      %c0_i32_71 = arith.constant 0 : i32
      %c0_i32_72 = arith.constant 0 : i32
      %c1_i32_73 = arith.constant 1 : i32
      %c0_i32_74 = arith.constant 0 : i32
      %159 = tpu.memref_slice %arg5[%158, %c0_i32_74] : memref<50260x128xf32, #tpu.memory_space<any>> -> memref<1x128xf32, #tpu.memory_space<any>>
      %c1_i32_75 = arith.constant 1 : i32
      %c0_i32_76 = arith.constant 0 : i32
      %160 = tpu.memref_slice %arg7[%c0_i32_71, %c1_i32_75, %c0_i32_76] : memref<2x8x128xf32, #tpu.memory_space<vmem>> -> memref<1x1x128xf32, #tpu.memory_space<vmem>>
      %161 = tpu.memref_squeeze %160 : memref<1x1x128xf32, #tpu.memory_space<vmem>> -> memref<1x128xf32, #tpu.memory_space<vmem>>
      %162 = tpu.memref_slice %arg8[%c0_i32_72, %c1_i32_73] : memref<2x8x!tpu.dma_semaphore, #tpu.memory_space<semaphore_mem>> -> memref<1x1x!tpu.dma_semaphore, #tpu.memory_space<semaphore_mem>>
      %163 = tpu.memref_squeeze %162 : memref<1x1x!tpu.dma_semaphore, #tpu.memory_space<semaphore_mem>> -> memref<!tpu.dma_semaphore, #tpu.memory_space<semaphore_mem>>
      tpu.enqueue_dma source(%159 : memref<1x128xf32, #tpu.memory_space<any>>) target(%161 : memref<1x128xf32, #tpu.memory_space<vmem>>) target_semaphore(%163 : memref<!tpu.dma_semaphore, #tpu.memory_space<semaphore_mem>>)
      %164 = arith.index_cast %arg0 : i32 to index
      %c2_77 = arith.constant 2 : index
      %165 = memref.load %arg2[%164, %c2_77] : memref<2x24xi32, #tpu.memory_space<smem>>
      %c0_i32_78 = arith.constant 0 : i32
      %c0_i32_79 = arith.constant 0 : i32
      %c2_i32_80 = arith.constant 2 : i32
      %c0_i32_81 = arith.constant 0 : i32
      %166 = tpu.memref_slice %arg5[%165, %c0_i32_81] : memref<50260x128xf32, #tpu.memory_space<any>> -> memref<1x128xf32, #tpu.memory_space<any>>
      %c2_i32_82 = arith.constant 2 : i32
      %c0_i32_83 = arith.constant 0 : i32
      %167 = tpu.memref_slice %arg7[%c0_i32_78, %c2_i32_82, %c0_i32_83] : memref<2x8x128xf32, #tpu.memory_space<vmem>> -> memref<1x1x128xf32, #tpu.memory_space<vmem>>
      %168 = tpu.memref_squeeze %167 : memref<1x1x128xf32, #tpu.memory_space<vmem>> -> memref<1x128xf32, #tpu.memory_space<vmem>>
      %169 = tpu.memref_slice %arg8[%c0_i32_79, %c2_i32_80] : memref<2x8x!tpu.dma_semaphore, #tpu.memory_space<semaphore_mem>> -> memref<1x1x!tpu.dma_semaphore, #tpu.memory_space<semaphore_mem>>
      %170 = tpu.memref_squeeze %169 : memref<1x1x!tpu.dma_semaphore, #tpu.memory_space<semaphore_mem>> -> memref<!tpu.dma_semaphore, #tpu.memory_space<semaphore_mem>>
      tpu.enqueue_dma source(%166 : memref<1x128xf32, #tpu.memory_space<any>>) target(%168 : memref<1x128xf32, #tpu.memory_space<vmem>>) target_semaphore(%170 : memref<!tpu.dma_semaphore, #tpu.memory_space<semaphore_mem>>)
      %171 = arith.index_cast %arg0 : i32 to index
      %c3_84 = arith.constant 3 : index
      %172 = memref.load %arg2[%171, %c3_84] : memref<2x24xi32, #tpu.memory_space<smem>>
      %c0_i32_85 = arith.constant 0 : i32
      %c0_i32_86 = arith.constant 0 : i32
      %c3_i32_87 = arith.constant 3 : i32
      %c0_i32_88 = arith.constant 0 : i32
      %173 = tpu.memref_slice %arg5[%172, %c0_i32_88] : memref<50260x128xf32, #tpu.memory_space<any>> -> memref<1x128xf32, #tpu.memory_space<any>>
      %c3_i32_89 = arith.constant 3 : i32
      %c0_i32_90 = arith.constant 0 : i32
      %174 = tpu.memref_slice %arg7[%c0_i32_85, %c3_i32_89, %c0_i32_90] : memref<2x8x128xf32, #tpu.memory_space<vmem>> -> memref<1x1x128xf32, #tpu.memory_space<vmem>>
      %175 = tpu.memref_squeeze %174 : memref<1x1x128xf32, #tpu.memory_space<vmem>> -> memref<1x128xf32, #tpu.memory_space<vmem>>
      %176 = tpu.memref_slice %arg8[%c0_i32_86, %c3_i32_87] : memref<2x8x!tpu.dma_semaphore, #tpu.memory_space<semaphore_mem>> -> memref<1x1x!tpu.dma_semaphore, #tpu.memory_space<semaphore_mem>>
      %177 = tpu.memref_squeeze %176 : memref<1x1x!tpu.dma_semaphore, #tpu.memory_space<semaphore_mem>> -> memref<!tpu.dma_semaphore, #tpu.memory_space<semaphore_mem>>
      tpu.enqueue_dma source(%173 : memref<1x128xf32, #tpu.memory_space<any>>) target(%175 : memref<1x128xf32, #tpu.memory_space<vmem>>) target_semaphore(%177 : memref<!tpu.dma_semaphore, #tpu.memory_space<semaphore_mem>>)
      %178 = arith.index_cast %arg0 : i32 to index
      %c4_91 = arith.constant 4 : index
      %179 = memref.load %arg2[%178, %c4_91] : memref<2x24xi32, #tpu.memory_space<smem>>
      %c0_i32_92 = arith.constant 0 : i32
      %c0_i32_93 = arith.constant 0 : i32
      %c4_i32_94 = arith.constant 4 : i32
      %c0_i32_95 = arith.constant 0 : i32
      %180 = tpu.memref_slice %arg5[%179, %c0_i32_95] : memref<50260x128xf32, #tpu.memory_space<any>> -> memref<1x128xf32, #tpu.memory_space<any>>
      %c4_i32_96 = arith.constant 4 : i32
      %c0_i32_97 = arith.constant 0 : i32
      %181 = tpu.memref_slice %arg7[%c0_i32_92, %c4_i32_96, %c0_i32_97] : memref<2x8x128xf32, #tpu.memory_space<vmem>> -> memref<1x1x128xf32, #tpu.memory_space<vmem>>
      %182 = tpu.memref_squeeze %181 : memref<1x1x128xf32, #tpu.memory_space<vmem>> -> memref<1x128xf32, #tpu.memory_space<vmem>>
      %183 = tpu.memref_slice %arg8[%c0_i32_93, %c4_i32_94] : memref<2x8x!tpu.dma_semaphore, #tpu.memory_space<semaphore_mem>> -> memref<1x1x!tpu.dma_semaphore, #tpu.memory_space<semaphore_mem>>
      %184 = tpu.memref_squeeze %183 : memref<1x1x!tpu.dma_semaphore, #tpu.memory_space<semaphore_mem>> -> memref<!tpu.dma_semaphore, #tpu.memory_space<semaphore_mem>>
      tpu.enqueue_dma source(%180 : memref<1x128xf32, #tpu.memory_space<any>>) target(%182 : memref<1x128xf32, #tpu.memory_space<vmem>>) target_semaphore(%184 : memref<!tpu.dma_semaphore, #tpu.memory_space<semaphore_mem>>)
      %185 = arith.index_cast %arg0 : i32 to index
      %c5_98 = arith.constant 5 : index
      %186 = memref.load %arg2[%185, %c5_98] : memref<2x24xi32, #tpu.memory_space<smem>>
      %c0_i32_99 = arith.constant 0 : i32
      %c0_i32_100 = arith.constant 0 : i32
      %c5_i32_101 = arith.constant 5 : i32
      %c0_i32_102 = arith.constant 0 : i32
      %187 = tpu.memref_slice %arg5[%186, %c0_i32_102] : memref<50260x128xf32, #tpu.memory_space<any>> -> memref<1x128xf32, #tpu.memory_space<any>>
      %c5_i32_103 = arith.constant 5 : i32
      %c0_i32_104 = arith.constant 0 : i32
      %188 = tpu.memref_slice %arg7[%c0_i32_99, %c5_i32_103, %c0_i32_104] : memref<2x8x128xf32, #tpu.memory_space<vmem>> -> memref<1x1x128xf32, #tpu.memory_space<vmem>>
      %189 = tpu.memref_squeeze %188 : memref<1x1x128xf32, #tpu.memory_space<vmem>> -> memref<1x128xf32, #tpu.memory_space<vmem>>
      %190 = tpu.memref_slice %arg8[%c0_i32_100, %c5_i32_101] : memref<2x8x!tpu.dma_semaphore, #tpu.memory_space<semaphore_mem>> -> memref<1x1x!tpu.dma_semaphore, #tpu.memory_space<semaphore_mem>>
      %191 = tpu.memref_squeeze %190 : memref<1x1x!tpu.dma_semaphore, #tpu.memory_space<semaphore_mem>> -> memref<!tpu.dma_semaphore, #tpu.memory_space<semaphore_mem>>
      tpu.enqueue_dma source(%187 : memref<1x128xf32, #tpu.memory_space<any>>) target(%189 : memref<1x128xf32, #tpu.memory_space<vmem>>) target_semaphore(%191 : memref<!tpu.dma_semaphore, #tpu.memory_space<semaphore_mem>>)
      %192 = arith.index_cast %arg0 : i32 to index
      %c6_105 = arith.constant 6 : index
      %193 = memref.load %arg2[%192, %c6_105] : memref<2x24xi32, #tpu.memory_space<smem>>
      %c0_i32_106 = arith.constant 0 : i32
      %c0_i32_107 = arith.constant 0 : i32
      %c6_i32_108 = arith.constant 6 : i32
      %c0_i32_109 = arith.constant 0 : i32
      %194 = tpu.memref_slice %arg5[%193, %c0_i32_109] : memref<50260x128xf32, #tpu.memory_space<any>> -> memref<1x128xf32, #tpu.memory_space<any>>
      %c6_i32_110 = arith.constant 6 : i32
      %c0_i32_111 = arith.constant 0 : i32
      %195 = tpu.memref_slice %arg7[%c0_i32_106, %c6_i32_110, %c0_i32_111] : memref<2x8x128xf32, #tpu.memory_space<vmem>> -> memref<1x1x128xf32, #tpu.memory_space<vmem>>
      %196 = tpu.memref_squeeze %195 : memref<1x1x128xf32, #tpu.memory_space<vmem>> -> memref<1x128xf32, #tpu.memory_space<vmem>>
      %197 = tpu.memref_slice %arg8[%c0_i32_107, %c6_i32_108] : memref<2x8x!tpu.dma_semaphore, #tpu.memory_space<semaphore_mem>> -> memref<1x1x!tpu.dma_semaphore, #tpu.memory_space<semaphore_mem>>
      %198 = tpu.memref_squeeze %197 : memref<1x1x!tpu.dma_semaphore, #tpu.memory_space<semaphore_mem>> -> memref<!tpu.dma_semaphore, #tpu.memory_space<semaphore_mem>>
      tpu.enqueue_dma source(%194 : memref<1x128xf32, #tpu.memory_space<any>>) target(%196 : memref<1x128xf32, #tpu.memory_space<vmem>>) target_semaphore(%198 : memref<!tpu.dma_semaphore, #tpu.memory_space<semaphore_mem>>)
      %199 = arith.index_cast %arg0 : i32 to index
      %c7_112 = arith.constant 7 : index
      %200 = memref.load %arg2[%199, %c7_112] : memref<2x24xi32, #tpu.memory_space<smem>>
      %c0_i32_113 = arith.constant 0 : i32
      %c0_i32_114 = arith.constant 0 : i32
      %c7_i32_115 = arith.constant 7 : i32
      %c0_i32_116 = arith.constant 0 : i32
      %201 = tpu.memref_slice %arg5[%200, %c0_i32_116] : memref<50260x128xf32, #tpu.memory_space<any>> -> memref<1x128xf32, #tpu.memory_space<any>>
      %c7_i32_117 = arith.constant 7 : i32
      %c0_i32_118 = arith.constant 0 : i32
      %202 = tpu.memref_slice %arg7[%c0_i32_113, %c7_i32_117, %c0_i32_118] : memref<2x8x128xf32, #tpu.memory_space<vmem>> -> memref<1x1x128xf32, #tpu.memory_space<vmem>>
      %203 = tpu.memref_squeeze %202 : memref<1x1x128xf32, #tpu.memory_space<vmem>> -> memref<1x128xf32, #tpu.memory_space<vmem>>
      %204 = tpu.memref_slice %arg8[%c0_i32_114, %c7_i32_115] : memref<2x8x!tpu.dma_semaphore, #tpu.memory_space<semaphore_mem>> -> memref<1x1x!tpu.dma_semaphore, #tpu.memory_space<semaphore_mem>>
      %205 = tpu.memref_squeeze %204 : memref<1x1x!tpu.dma_semaphore, #tpu.memory_space<semaphore_mem>> -> memref<!tpu.dma_semaphore, #tpu.memory_space<semaphore_mem>>
      tpu.enqueue_dma source(%201 : memref<1x128xf32, #tpu.memory_space<any>>) target(%203 : memref<1x128xf32, #tpu.memory_space<vmem>>) target_semaphore(%205 : memref<!tpu.dma_semaphore, #tpu.memory_space<semaphore_mem>>)
    } else {
    }
    %c1_i32_2 = arith.constant 1 : i32
    %7 = arith.addi %arg1, %c1_i32_2 : i32
    %c3_i32 = arith.constant 3 : i32
    %8 = arith.cmpi slt, %7, %c3_i32 : i32
    %9 = arith.extui %8 : i1 to i32
    %c0_i32_3 = arith.constant 0 : i32
    %10 = arith.cmpi ne, %9, %c0_i32_3 : i32
    scf.if %10 {
      %c1_i32_63 = arith.constant 1 : i32
      %150 = arith.addi %arg1, %c1_i32_63 : i32
      %c8_i32_64 = arith.constant 8 : i32
      %151 = arith.muli %150, %c8_i32_64 : i32
      %c0_i32_65 = arith.constant 0 : i32
      %152 = arith.addi %151, %c0_i32_65 : i32
      %153 = arith.index_cast %arg0 : i32 to index
      %154 = arith.index_cast %152 : i32 to index
      %155 = memref.load %arg2[%153, %154] : memref<2x24xi32, #tpu.memory_space<smem>>
      %c0_i32_66 = arith.constant 0 : i32
      %c0_i32_67 = arith.constant 0 : i32
      %156 = tpu.memref_slice %arg5[%155, %c0_i32_67] : memref<50260x128xf32, #tpu.memory_space<any>> -> memref<1x128xf32, #tpu.memory_space<any>>
      %c0_i32_68 = arith.constant 0 : i32
      %c0_i32_69 = arith.constant 0 : i32
      %157 = tpu.memref_slice %arg7[%1, %c0_i32_68, %c0_i32_69] : memref<2x8x128xf32, #tpu.memory_space<vmem>> -> memref<1x1x128xf32, #tpu.memory_space<vmem>>
      %158 = tpu.memref_squeeze %157 : memref<1x1x128xf32, #tpu.memory_space<vmem>> -> memref<1x128xf32, #tpu.memory_space<vmem>>
      %159 = tpu.memref_slice %arg8[%1, %c0_i32_66] : memref<2x8x!tpu.dma_semaphore, #tpu.memory_space<semaphore_mem>> -> memref<1x1x!tpu.dma_semaphore, #tpu.memory_space<semaphore_mem>>
      %160 = tpu.memref_squeeze %159 : memref<1x1x!tpu.dma_semaphore, #tpu.memory_space<semaphore_mem>> -> memref<!tpu.dma_semaphore, #tpu.memory_space<semaphore_mem>>
      tpu.enqueue_dma source(%156 : memref<1x128xf32, #tpu.memory_space<any>>) target(%158 : memref<1x128xf32, #tpu.memory_space<vmem>>) target_semaphore(%160 : memref<!tpu.dma_semaphore, #tpu.memory_space<semaphore_mem>>)
      %c1_i32_70 = arith.constant 1 : i32
      %161 = arith.addi %151, %c1_i32_70 : i32
      %162 = arith.index_cast %arg0 : i32 to index
      %163 = arith.index_cast %161 : i32 to index
      %164 = memref.load %arg2[%162, %163] : memref<2x24xi32, #tpu.memory_space<smem>>
      %c1_i32_71 = arith.constant 1 : i32
      %c0_i32_72 = arith.constant 0 : i32
      %165 = tpu.memref_slice %arg5[%164, %c0_i32_72] : memref<50260x128xf32, #tpu.memory_space<any>> -> memref<1x128xf32, #tpu.memory_space<any>>
      %c1_i32_73 = arith.constant 1 : i32
      %c0_i32_74 = arith.constant 0 : i32
      %166 = tpu.memref_slice %arg7[%1, %c1_i32_73, %c0_i32_74] : memref<2x8x128xf32, #tpu.memory_space<vmem>> -> memref<1x1x128xf32, #tpu.memory_space<vmem>>
      %167 = tpu.memref_squeeze %166 : memref<1x1x128xf32, #tpu.memory_space<vmem>> -> memref<1x128xf32, #tpu.memory_space<vmem>>
      %168 = tpu.memref_slice %arg8[%1, %c1_i32_71] : memref<2x8x!tpu.dma_semaphore, #tpu.memory_space<semaphore_mem>> -> memref<1x1x!tpu.dma_semaphore, #tpu.memory_space<semaphore_mem>>
      %169 = tpu.memref_squeeze %168 : memref<1x1x!tpu.dma_semaphore, #tpu.memory_space<semaphore_mem>> -> memref<!tpu.dma_semaphore, #tpu.memory_space<semaphore_mem>>
      tpu.enqueue_dma source(%165 : memref<1x128xf32, #tpu.memory_space<any>>) target(%167 : memref<1x128xf32, #tpu.memory_space<vmem>>) target_semaphore(%169 : memref<!tpu.dma_semaphore, #tpu.memory_space<semaphore_mem>>)
      %c2_i32_75 = arith.constant 2 : i32
      %170 = arith.addi %151, %c2_i32_75 : i32
      %171 = arith.index_cast %arg0 : i32 to index
      %172 = arith.index_cast %170 : i32 to index
      %173 = memref.load %arg2[%171, %172] : memref<2x24xi32, #tpu.memory_space<smem>>
      %c2_i32_76 = arith.constant 2 : i32
      %c0_i32_77 = arith.constant 0 : i32
      %174 = tpu.memref_slice %arg5[%173, %c0_i32_77] : memref<50260x128xf32, #tpu.memory_space<any>> -> memref<1x128xf32, #tpu.memory_space<any>>
      %c2_i32_78 = arith.constant 2 : i32
      %c0_i32_79 = arith.constant 0 : i32
      %175 = tpu.memref_slice %arg7[%1, %c2_i32_78, %c0_i32_79] : memref<2x8x128xf32, #tpu.memory_space<vmem>> -> memref<1x1x128xf32, #tpu.memory_space<vmem>>
      %176 = tpu.memref_squeeze %175 : memref<1x1x128xf32, #tpu.memory_space<vmem>> -> memref<1x128xf32, #tpu.memory_space<vmem>>
      %177 = tpu.memref_slice %arg8[%1, %c2_i32_76] : memref<2x8x!tpu.dma_semaphore, #tpu.memory_space<semaphore_mem>> -> memref<1x1x!tpu.dma_semaphore, #tpu.memory_space<semaphore_mem>>
      %178 = tpu.memref_squeeze %177 : memref<1x1x!tpu.dma_semaphore, #tpu.memory_space<semaphore_mem>> -> memref<!tpu.dma_semaphore, #tpu.memory_space<semaphore_mem>>
      tpu.enqueue_dma source(%174 : memref<1x128xf32, #tpu.memory_space<any>>) target(%176 : memref<1x128xf32, #tpu.memory_space<vmem>>) target_semaphore(%178 : memref<!tpu.dma_semaphore, #tpu.memory_space<semaphore_mem>>)
      %c3_i32_80 = arith.constant 3 : i32
      %179 = arith.addi %151, %c3_i32_80 : i32
      %180 = arith.index_cast %arg0 : i32 to index
      %181 = arith.index_cast %179 : i32 to index
      %182 = memref.load %arg2[%180, %181] : memref<2x24xi32, #tpu.memory_space<smem>>
      %c3_i32_81 = arith.constant 3 : i32
      %c0_i32_82 = arith.constant 0 : i32
      %183 = tpu.memref_slice %arg5[%182, %c0_i32_82] : memref<50260x128xf32, #tpu.memory_space<any>> -> memref<1x128xf32, #tpu.memory_space<any>>
      %c3_i32_83 = arith.constant 3 : i32
      %c0_i32_84 = arith.constant 0 : i32
      %184 = tpu.memref_slice %arg7[%1, %c3_i32_83, %c0_i32_84] : memref<2x8x128xf32, #tpu.memory_space<vmem>> -> memref<1x1x128xf32, #tpu.memory_space<vmem>>
      %185 = tpu.memref_squeeze %184 : memref<1x1x128xf32, #tpu.memory_space<vmem>> -> memref<1x128xf32, #tpu.memory_space<vmem>>
      %186 = tpu.memref_slice %arg8[%1, %c3_i32_81] : memref<2x8x!tpu.dma_semaphore, #tpu.memory_space<semaphore_mem>> -> memref<1x1x!tpu.dma_semaphore, #tpu.memory_space<semaphore_mem>>
      %187 = tpu.memref_squeeze %186 : memref<1x1x!tpu.dma_semaphore, #tpu.memory_space<semaphore_mem>> -> memref<!tpu.dma_semaphore, #tpu.memory_space<semaphore_mem>>
      tpu.enqueue_dma source(%183 : memref<1x128xf32, #tpu.memory_space<any>>) target(%185 : memref<1x128xf32, #tpu.memory_space<vmem>>) target_semaphore(%187 : memref<!tpu.dma_semaphore, #tpu.memory_space<semaphore_mem>>)
      %c4_i32_85 = arith.constant 4 : i32
      %188 = arith.addi %151, %c4_i32_85 : i32
      %189 = arith.index_cast %arg0 : i32 to index
      %190 = arith.index_cast %188 : i32 to index
      %191 = memref.load %arg2[%189, %190] : memref<2x24xi32, #tpu.memory_space<smem>>
      %c4_i32_86 = arith.constant 4 : i32
      %c0_i32_87 = arith.constant 0 : i32
      %192 = tpu.memref_slice %arg5[%191, %c0_i32_87] : memref<50260x128xf32, #tpu.memory_space<any>> -> memref<1x128xf32, #tpu.memory_space<any>>
      %c4_i32_88 = arith.constant 4 : i32
      %c0_i32_89 = arith.constant 0 : i32
      %193 = tpu.memref_slice %arg7[%1, %c4_i32_88, %c0_i32_89] : memref<2x8x128xf32, #tpu.memory_space<vmem>> -> memref<1x1x128xf32, #tpu.memory_space<vmem>>
      %194 = tpu.memref_squeeze %193 : memref<1x1x128xf32, #tpu.memory_space<vmem>> -> memref<1x128xf32, #tpu.memory_space<vmem>>
      %195 = tpu.memref_slice %arg8[%1, %c4_i32_86] : memref<2x8x!tpu.dma_semaphore, #tpu.memory_space<semaphore_mem>> -> memref<1x1x!tpu.dma_semaphore, #tpu.memory_space<semaphore_mem>>
      %196 = tpu.memref_squeeze %195 : memref<1x1x!tpu.dma_semaphore, #tpu.memory_space<semaphore_mem>> -> memref<!tpu.dma_semaphore, #tpu.memory_space<semaphore_mem>>
      tpu.enqueue_dma source(%192 : memref<1x128xf32, #tpu.memory_space<any>>) target(%194 : memref<1x128xf32, #tpu.memory_space<vmem>>) target_semaphore(%196 : memref<!tpu.dma_semaphore, #tpu.memory_space<semaphore_mem>>)
      %c5_i32_90 = arith.constant 5 : i32
      %197 = arith.addi %151, %c5_i32_90 : i32
      %198 = arith.index_cast %arg0 : i32 to index
      %199 = arith.index_cast %197 : i32 to index
      %200 = memref.load %arg2[%198, %199] : memref<2x24xi32, #tpu.memory_space<smem>>
      %c5_i32_91 = arith.constant 5 : i32
      %c0_i32_92 = arith.constant 0 : i32
      %201 = tpu.memref_slice %arg5[%200, %c0_i32_92] : memref<50260x128xf32, #tpu.memory_space<any>> -> memref<1x128xf32, #tpu.memory_space<any>>
      %c5_i32_93 = arith.constant 5 : i32
      %c0_i32_94 = arith.constant 0 : i32
      %202 = tpu.memref_slice %arg7[%1, %c5_i32_93, %c0_i32_94] : memref<2x8x128xf32, #tpu.memory_space<vmem>> -> memref<1x1x128xf32, #tpu.memory_space<vmem>>
      %203 = tpu.memref_squeeze %202 : memref<1x1x128xf32, #tpu.memory_space<vmem>> -> memref<1x128xf32, #tpu.memory_space<vmem>>
      %204 = tpu.memref_slice %arg8[%1, %c5_i32_91] : memref<2x8x!tpu.dma_semaphore, #tpu.memory_space<semaphore_mem>> -> memref<1x1x!tpu.dma_semaphore, #tpu.memory_space<semaphore_mem>>
      %205 = tpu.memref_squeeze %204 : memref<1x1x!tpu.dma_semaphore, #tpu.memory_space<semaphore_mem>> -> memref<!tpu.dma_semaphore, #tpu.memory_space<semaphore_mem>>
      tpu.enqueue_dma source(%201 : memref<1x128xf32, #tpu.memory_space<any>>) target(%203 : memref<1x128xf32, #tpu.memory_space<vmem>>) target_semaphore(%205 : memref<!tpu.dma_semaphore, #tpu.memory_space<semaphore_mem>>)
      %c6_i32_95 = arith.constant 6 : i32
      %206 = arith.addi %151, %c6_i32_95 : i32
      %207 = arith.index_cast %arg0 : i32 to index
      %208 = arith.index_cast %206 : i32 to index
      %209 = memref.load %arg2[%207, %208] : memref<2x24xi32, #tpu.memory_space<smem>>
      %c6_i32_96 = arith.constant 6 : i32
      %c0_i32_97 = arith.constant 0 : i32
      %210 = tpu.memref_slice %arg5[%209, %c0_i32_97] : memref<50260x128xf32, #tpu.memory_space<any>> -> memref<1x128xf32, #tpu.memory_space<any>>
      %c6_i32_98 = arith.constant 6 : i32
      %c0_i32_99 = arith.constant 0 : i32
      %211 = tpu.memref_slice %arg7[%1, %c6_i32_98, %c0_i32_99] : memref<2x8x128xf32, #tpu.memory_space<vmem>> -> memref<1x1x128xf32, #tpu.memory_space<vmem>>
      %212 = tpu.memref_squeeze %211 : memref<1x1x128xf32, #tpu.memory_space<vmem>> -> memref<1x128xf32, #tpu.memory_space<vmem>>
      %213 = tpu.memref_slice %arg8[%1, %c6_i32_96] : memref<2x8x!tpu.dma_semaphore, #tpu.memory_space<semaphore_mem>> -> memref<1x1x!tpu.dma_semaphore, #tpu.memory_space<semaphore_mem>>
      %214 = tpu.memref_squeeze %213 : memref<1x1x!tpu.dma_semaphore, #tpu.memory_space<semaphore_mem>> -> memref<!tpu.dma_semaphore, #tpu.memory_space<semaphore_mem>>
      tpu.enqueue_dma source(%210 : memref<1x128xf32, #tpu.memory_space<any>>) target(%212 : memref<1x128xf32, #tpu.memory_space<vmem>>) target_semaphore(%214 : memref<!tpu.dma_semaphore, #tpu.memory_space<semaphore_mem>>)
      %c7_i32_100 = arith.constant 7 : i32
      %215 = arith.addi %151, %c7_i32_100 : i32
      %216 = arith.index_cast %arg0 : i32 to index
      %217 = arith.index_cast %215 : i32 to index
      %218 = memref.load %arg2[%216, %217] : memref<2x24xi32, #tpu.memory_space<smem>>
      %c7_i32_101 = arith.constant 7 : i32
      %c0_i32_102 = arith.constant 0 : i32
      %219 = tpu.memref_slice %arg5[%218, %c0_i32_102] : memref<50260x128xf32, #tpu.memory_space<any>> -> memref<1x128xf32, #tpu.memory_space<any>>
      %c7_i32_103 = arith.constant 7 : i32
      %c0_i32_104 = arith.constant 0 : i32
      %220 = tpu.memref_slice %arg7[%1, %c7_i32_103, %c0_i32_104] : memref<2x8x128xf32, #tpu.memory_space<vmem>> -> memref<1x1x128xf32, #tpu.memory_space<vmem>>
      %221 = tpu.memref_squeeze %220 : memref<1x1x128xf32, #tpu.memory_space<vmem>> -> memref<1x128xf32, #tpu.memory_space<vmem>>
      %222 = tpu.memref_slice %arg8[%1, %c7_i32_101] : memref<2x8x!tpu.dma_semaphore, #tpu.memory_space<semaphore_mem>> -> memref<1x1x!tpu.dma_semaphore, #tpu.memory_space<semaphore_mem>>
      %223 = tpu.memref_squeeze %222 : memref<1x1x!tpu.dma_semaphore, #tpu.memory_space<semaphore_mem>> -> memref<!tpu.dma_semaphore, #tpu.memory_space<semaphore_mem>>
      tpu.enqueue_dma source(%219 : memref<1x128xf32, #tpu.memory_space<any>>) target(%221 : memref<1x128xf32, #tpu.memory_space<vmem>>) target_semaphore(%223 : memref<!tpu.dma_semaphore, #tpu.memory_space<semaphore_mem>>)
    } else {
    }
    %c0_i32_4 = arith.constant 0 : i32
    %c0_i32_5 = arith.constant 0 : i32
    %c0_i32_6 = arith.constant 0 : i32
    %11 = tpu.memref_slice %arg5[%c0_i32_5, %c0_i32_6] : memref<50260x128xf32, #tpu.memory_space<any>> -> memref<1x128xf32, #tpu.memory_space<any>>
    %c0_i32_7 = arith.constant 0 : i32
    %c0_i32_8 = arith.constant 0 : i32
    %12 = tpu.memref_slice %arg7[%0, %c0_i32_7, %c0_i32_8] : memref<2x8x128xf32, #tpu.memory_space<vmem>> -> memref<1x1x128xf32, #tpu.memory_space<vmem>>
    %13 = tpu.memref_squeeze %12 : memref<1x1x128xf32, #tpu.memory_space<vmem>> -> memref<1x128xf32, #tpu.memory_space<vmem>>
    %14 = tpu.memref_slice %arg8[%0, %c0_i32_4] : memref<2x8x!tpu.dma_semaphore, #tpu.memory_space<semaphore_mem>> -> memref<1x1x!tpu.dma_semaphore, #tpu.memory_space<semaphore_mem>>
    %15 = tpu.memref_squeeze %14 : memref<1x1x!tpu.dma_semaphore, #tpu.memory_space<semaphore_mem>> -> memref<!tpu.dma_semaphore, #tpu.memory_space<semaphore_mem>>
    tpu.wait_dma2 semaphore(%15 : memref<!tpu.dma_semaphore, #tpu.memory_space<semaphore_mem>>) src(%11 : memref<1x128xf32, #tpu.memory_space<any>>) dst(%13 : memref<1x128xf32, #tpu.memory_space<vmem>>)
    %c1_i32_9 = arith.constant 1 : i32
    %c0_i32_10 = arith.constant 0 : i32
    %c0_i32_11 = arith.constant 0 : i32
    %16 = tpu.memref_slice %arg5[%c0_i32_10, %c0_i32_11] : memref<50260x128xf32, #tpu.memory_space<any>> -> memref<1x128xf32, #tpu.memory_space<any>>
    %c1_i32_12 = arith.constant 1 : i32
    %c0_i32_13 = arith.constant 0 : i32
    %17 = tpu.memref_slice %arg7[%0, %c1_i32_12, %c0_i32_13] : memref<2x8x128xf32, #tpu.memory_space<vmem>> -> memref<1x1x128xf32, #tpu.memory_space<vmem>>
    %18 = tpu.memref_squeeze %17 : memref<1x1x128xf32, #tpu.memory_space<vmem>> -> memref<1x128xf32, #tpu.memory_space<vmem>>
    %19 = tpu.memref_slice %arg8[%0, %c1_i32_9] : memref<2x8x!tpu.dma_semaphore, #tpu.memory_space<semaphore_mem>> -> memref<1x1x!tpu.dma_semaphore, #tpu.memory_space<semaphore_mem>>
    %20 = tpu.memref_squeeze %19 : memref<1x1x!tpu.dma_semaphore, #tpu.memory_space<semaphore_mem>> -> memref<!tpu.dma_semaphore, #tpu.memory_space<semaphore_mem>>
    tpu.wait_dma2 semaphore(%20 : memref<!tpu.dma_semaphore, #tpu.memory_space<semaphore_mem>>) src(%16 : memref<1x128xf32, #tpu.memory_space<any>>) dst(%18 : memref<1x128xf32, #tpu.memory_space<vmem>>)
    %c2_i32 = arith.constant 2 : i32
    %c0_i32_14 = arith.constant 0 : i32
    %c0_i32_15 = arith.constant 0 : i32
    %21 = tpu.memref_slice %arg5[%c0_i32_14, %c0_i32_15] : memref<50260x128xf32, #tpu.memory_space<any>> -> memref<1x128xf32, #tpu.memory_space<any>>
    %c2_i32_16 = arith.constant 2 : i32
    %c0_i32_17 = arith.constant 0 : i32
    %22 = tpu.memref_slice %arg7[%0, %c2_i32_16, %c0_i32_17] : memref<2x8x128xf32, #tpu.memory_space<vmem>> -> memref<1x1x128xf32, #tpu.memory_space<vmem>>
    %23 = tpu.memref_squeeze %22 : memref<1x1x128xf32, #tpu.memory_space<vmem>> -> memref<1x128xf32, #tpu.memory_space<vmem>>
    %24 = tpu.memref_slice %arg8[%0, %c2_i32] : memref<2x8x!tpu.dma_semaphore, #tpu.memory_space<semaphore_mem>> -> memref<1x1x!tpu.dma_semaphore, #tpu.memory_space<semaphore_mem>>
    %25 = tpu.memref_squeeze %24 : memref<1x1x!tpu.dma_semaphore, #tpu.memory_space<semaphore_mem>> -> memref<!tpu.dma_semaphore, #tpu.memory_space<semaphore_mem>>
    tpu.wait_dma2 semaphore(%25 : memref<!tpu.dma_semaphore, #tpu.memory_space<semaphore_mem>>) src(%21 : memref<1x128xf32, #tpu.memory_space<any>>) dst(%23 : memref<1x128xf32, #tpu.memory_space<vmem>>)
    %c3_i32_18 = arith.constant 3 : i32
    %c0_i32_19 = arith.constant 0 : i32
    %c0_i32_20 = arith.constant 0 : i32
    %26 = tpu.memref_slice %arg5[%c0_i32_19, %c0_i32_20] : memref<50260x128xf32, #tpu.memory_space<any>> -> memref<1x128xf32, #tpu.memory_space<any>>
    %c3_i32_21 = arith.constant 3 : i32
    %c0_i32_22 = arith.constant 0 : i32
    %27 = tpu.memref_slice %arg7[%0, %c3_i32_21, %c0_i32_22] : memref<2x8x128xf32, #tpu.memory_space<vmem>> -> memref<1x1x128xf32, #tpu.memory_space<vmem>>
    %28 = tpu.memref_squeeze %27 : memref<1x1x128xf32, #tpu.memory_space<vmem>> -> memref<1x128xf32, #tpu.memory_space<vmem>>
    %29 = tpu.memref_slice %arg8[%0, %c3_i32_18] : memref<2x8x!tpu.dma_semaphore, #tpu.memory_space<semaphore_mem>> -> memref<1x1x!tpu.dma_semaphore, #tpu.memory_space<semaphore_mem>>
    %30 = tpu.memref_squeeze %29 : memref<1x1x!tpu.dma_semaphore, #tpu.memory_space<semaphore_mem>> -> memref<!tpu.dma_semaphore, #tpu.memory_space<semaphore_mem>>
    tpu.wait_dma2 semaphore(%30 : memref<!tpu.dma_semaphore, #tpu.memory_space<semaphore_mem>>) src(%26 : memref<1x128xf32, #tpu.memory_space<any>>) dst(%28 : memref<1x128xf32, #tpu.memory_space<vmem>>)
    %c4_i32 = arith.constant 4 : i32
    %c0_i32_23 = arith.constant 0 : i32
    %c0_i32_24 = arith.constant 0 : i32
    %31 = tpu.memref_slice %arg5[%c0_i32_23, %c0_i32_24] : memref<50260x128xf32, #tpu.memory_space<any>> -> memref<1x128xf32, #tpu.memory_space<any>>
    %c4_i32_25 = arith.constant 4 : i32
    %c0_i32_26 = arith.constant 0 : i32
    %32 = tpu.memref_slice %arg7[%0, %c4_i32_25, %c0_i32_26] : memref<2x8x128xf32, #tpu.memory_space<vmem>> -> memref<1x1x128xf32, #tpu.memory_space<vmem>>
    %33 = tpu.memref_squeeze %32 : memref<1x1x128xf32, #tpu.memory_space<vmem>> -> memref<1x128xf32, #tpu.memory_space<vmem>>
    %34 = tpu.memref_slice %arg8[%0, %c4_i32] : memref<2x8x!tpu.dma_semaphore, #tpu.memory_space<semaphore_mem>> -> memref<1x1x!tpu.dma_semaphore, #tpu.memory_space<semaphore_mem>>
    %35 = tpu.memref_squeeze %34 : memref<1x1x!tpu.dma_semaphore, #tpu.memory_space<semaphore_mem>> -> memref<!tpu.dma_semaphore, #tpu.memory_space<semaphore_mem>>
    tpu.wait_dma2 semaphore(%35 : memref<!tpu.dma_semaphore, #tpu.memory_space<semaphore_mem>>) src(%31 : memref<1x128xf32, #tpu.memory_space<any>>) dst(%33 : memref<1x128xf32, #tpu.memory_space<vmem>>)
    %c5_i32 = arith.constant 5 : i32
    %c0_i32_27 = arith.constant 0 : i32
    %c0_i32_28 = arith.constant 0 : i32
    %36 = tpu.memref_slice %arg5[%c0_i32_27, %c0_i32_28] : memref<50260x128xf32, #tpu.memory_space<any>> -> memref<1x128xf32, #tpu.memory_space<any>>
    %c5_i32_29 = arith.constant 5 : i32
    %c0_i32_30 = arith.constant 0 : i32
    %37 = tpu.memref_slice %arg7[%0, %c5_i32_29, %c0_i32_30] : memref<2x8x128xf32, #tpu.memory_space<vmem>> -> memref<1x1x128xf32, #tpu.memory_space<vmem>>
    %38 = tpu.memref_squeeze %37 : memref<1x1x128xf32, #tpu.memory_space<vmem>> -> memref<1x128xf32, #tpu.memory_space<vmem>>
    %39 = tpu.memref_slice %arg8[%0, %c5_i32] : memref<2x8x!tpu.dma_semaphore, #tpu.memory_space<semaphore_mem>> -> memref<1x1x!tpu.dma_semaphore, #tpu.memory_space<semaphore_mem>>
    %40 = tpu.memref_squeeze %39 : memref<1x1x!tpu.dma_semaphore, #tpu.memory_space<semaphore_mem>> -> memref<!tpu.dma_semaphore, #tpu.memory_space<semaphore_mem>>
    tpu.wait_dma2 semaphore(%40 : memref<!tpu.dma_semaphore, #tpu.memory_space<semaphore_mem>>) src(%36 : memref<1x128xf32, #tpu.memory_space<any>>) dst(%38 : memref<1x128xf32, #tpu.memory_space<vmem>>)
    %c6_i32 = arith.constant 6 : i32
    %c0_i32_31 = arith.constant 0 : i32
    %c0_i32_32 = arith.constant 0 : i32
    %41 = tpu.memref_slice %arg5[%c0_i32_31, %c0_i32_32] : memref<50260x128xf32, #tpu.memory_space<any>> -> memref<1x128xf32, #tpu.memory_space<any>>
    %c6_i32_33 = arith.constant 6 : i32
    %c0_i32_34 = arith.constant 0 : i32
    %42 = tpu.memref_slice %arg7[%0, %c6_i32_33, %c0_i32_34] : memref<2x8x128xf32, #tpu.memory_space<vmem>> -> memref<1x1x128xf32, #tpu.memory_space<vmem>>
    %43 = tpu.memref_squeeze %42 : memref<1x1x128xf32, #tpu.memory_space<vmem>> -> memref<1x128xf32, #tpu.memory_space<vmem>>
    %44 = tpu.memref_slice %arg8[%0, %c6_i32] : memref<2x8x!tpu.dma_semaphore, #tpu.memory_space<semaphore_mem>> -> memref<1x1x!tpu.dma_semaphore, #tpu.memory_space<semaphore_mem>>
    %45 = tpu.memref_squeeze %44 : memref<1x1x!tpu.dma_semaphore, #tpu.memory_space<semaphore_mem>> -> memref<!tpu.dma_semaphore, #tpu.memory_space<semaphore_mem>>
    tpu.wait_dma2 semaphore(%45 : memref<!tpu.dma_semaphore, #tpu.memory_space<semaphore_mem>>) src(%41 : memref<1x128xf32, #tpu.memory_space<any>>) dst(%43 : memref<1x128xf32, #tpu.memory_space<vmem>>)
    %c7_i32 = arith.constant 7 : i32
    %c0_i32_35 = arith.constant 0 : i32
    %c0_i32_36 = arith.constant 0 : i32
    %46 = tpu.memref_slice %arg5[%c0_i32_35, %c0_i32_36] : memref<50260x128xf32, #tpu.memory_space<any>> -> memref<1x128xf32, #tpu.memory_space<any>>
    %c7_i32_37 = arith.constant 7 : i32
    %c0_i32_38 = arith.constant 0 : i32
    %47 = tpu.memref_slice %arg7[%0, %c7_i32_37, %c0_i32_38] : memref<2x8x128xf32, #tpu.memory_space<vmem>> -> memref<1x1x128xf32, #tpu.memory_space<vmem>>
    %48 = tpu.memref_squeeze %47 : memref<1x1x128xf32, #tpu.memory_space<vmem>> -> memref<1x128xf32, #tpu.memory_space<vmem>>
    %49 = tpu.memref_slice %arg8[%0, %c7_i32] : memref<2x8x!tpu.dma_semaphore, #tpu.memory_space<semaphore_mem>> -> memref<1x1x!tpu.dma_semaphore, #tpu.memory_space<semaphore_mem>>
    %50 = tpu.memref_squeeze %49 : memref<1x1x!tpu.dma_semaphore, #tpu.memory_space<semaphore_mem>> -> memref<!tpu.dma_semaphore, #tpu.memory_space<semaphore_mem>>
    tpu.wait_dma2 semaphore(%50 : memref<!tpu.dma_semaphore, #tpu.memory_space<semaphore_mem>>) src(%46 : memref<1x128xf32, #tpu.memory_space<any>>) dst(%48 : memref<1x128xf32, #tpu.memory_space<vmem>>)
    %c8_i32 = arith.constant 8 : i32
    %51 = arith.muli %arg1, %c8_i32 : i32
    %52 = tpu.iota {dimensions = array<i32: 0>} : vector<8x1xi32>
    %53 = vector.broadcast %51 : i32 to vector<8x1xi32>
    %54 = arith.addi %53, %52 : vector<8x1xi32>
    %55 = arith.index_cast %0 : i32 to index
    %c0 = arith.constant 0 : index
    %c0_39 = arith.constant 0 : index
    %56 = vector.load %arg7[%55, %c0, %c0_39] : memref<2x8x128xf32, #tpu.memory_space<vmem>>, vector<1x8x128xf32>
    %57 = vector.shape_cast %56 : vector<1x8x128xf32> to vector<8x128xf32>
    %c0_i32_40 = arith.constant 0 : i32
    %58 = arith.addi %3, %c0_i32_40 : i32
    %59 = vector.broadcast %58 : i32 to vector<8x1xi32>
    %60 = arith.cmpi eq, %54, %59 : vector<8x1xi32>
    %c0_41 = arith.constant 0 : index
    %c0_42 = arith.constant 0 : index
    %61 = vector.load %arg4[%c0_41, %c0_42] : memref<10x128xf32, #tpu.memory_space<vmem>>, vector<1x128xf32>
    %62 = vector.shape_cast %60 : vector<8x1xi1> to vector<8x1xi1>
    %63 = vector.broadcast %62 : vector<8x1xi1> to vector<8x128xi1>
    %64 = vector.shape_cast %61 : vector<1x128xf32> to vector<1x128xf32>
    %65 = vector.broadcast %64 : vector<1x128xf32> to vector<8x128xf32>
    %66 = arith.select %63, %65, %57 : vector<8x128xi1>, vector<8x128xf32>
    %c1_i32_43 = arith.constant 1 : i32
    %67 = arith.addi %3, %c1_i32_43 : i32
    %68 = vector.broadcast %67 : i32 to vector<8x1xi32>
    %69 = arith.cmpi eq, %54, %68 : vector<8x1xi32>
    %c1 = arith.constant 1 : index
    %c0_44 = arith.constant 0 : index
    %70 = vector.load %arg4[%c1, %c0_44] : memref<10x128xf32, #tpu.memory_space<vmem>>, vector<1x128xf32>
    %71 = vector.shape_cast %69 : vector<8x1xi1> to vector<8x1xi1>
    %72 = vector.broadcast %71 : vector<8x1xi1> to vector<8x128xi1>
    %73 = vector.shape_cast %70 : vector<1x128xf32> to vector<1x128xf32>
    %74 = vector.broadcast %73 : vector<1x128xf32> to vector<8x128xf32>
    %75 = arith.select %72, %74, %66 : vector<8x128xi1>, vector<8x128xf32>
    %c2_i32_45 = arith.constant 2 : i32
    %76 = arith.addi %3, %c2_i32_45 : i32
    %77 = vector.broadcast %76 : i32 to vector<8x1xi32>
    %78 = arith.cmpi eq, %54, %77 : vector<8x1xi32>
    %c2 = arith.constant 2 : index
    %c0_46 = arith.constant 0 : index
    %79 = vector.load %arg4[%c2, %c0_46] : memref<10x128xf32, #tpu.memory_space<vmem>>, vector<1x128xf32>
    %80 = vector.shape_cast %78 : vector<8x1xi1> to vector<8x1xi1>
    %81 = vector.broadcast %80 : vector<8x1xi1> to vector<8x128xi1>
    %82 = vector.shape_cast %79 : vector<1x128xf32> to vector<1x128xf32>
    %83 = vector.broadcast %82 : vector<1x128xf32> to vector<8x128xf32>
    %84 = arith.select %81, %83, %75 : vector<8x128xi1>, vector<8x128xf32>
    %c3_i32_47 = arith.constant 3 : i32
    %85 = arith.addi %3, %c3_i32_47 : i32
    %86 = vector.broadcast %85 : i32 to vector<8x1xi32>
    %87 = arith.cmpi eq, %54, %86 : vector<8x1xi32>
    %c3 = arith.constant 3 : index
    %c0_48 = arith.constant 0 : index
    %88 = vector.load %arg4[%c3, %c0_48] : memref<10x128xf32, #tpu.memory_space<vmem>>, vector<1x128xf32>
    %89 = vector.shape_cast %87 : vector<8x1xi1> to vector<8x1xi1>
    %90 = vector.broadcast %89 : vector<8x1xi1> to vector<8x128xi1>
    %91 = vector.shape_cast %88 : vector<1x128xf32> to vector<1x128xf32>
    %92 = vector.broadcast %91 : vector<1x128xf32> to vector<8x128xf32>
    %93 = arith.select %90, %92, %84 : vector<8x128xi1>, vector<8x128xf32>
    %c4_i32_49 = arith.constant 4 : i32
    %94 = arith.addi %3, %c4_i32_49 : i32
    %95 = vector.broadcast %94 : i32 to vector<8x1xi32>
    %96 = arith.cmpi eq, %54, %95 : vector<8x1xi32>
    %c4 = arith.constant 4 : index
    %c0_50 = arith.constant 0 : index
    %97 = vector.load %arg4[%c4, %c0_50] : memref<10x128xf32, #tpu.memory_space<vmem>>, vector<1x128xf32>
    %98 = vector.shape_cast %96 : vector<8x1xi1> to vector<8x1xi1>
    %99 = vector.broadcast %98 : vector<8x1xi1> to vector<8x128xi1>
    %100 = vector.shape_cast %97 : vector<1x128xf32> to vector<1x128xf32>
    %101 = vector.broadcast %100 : vector<1x128xf32> to vector<8x128xf32>
    %102 = arith.select %99, %101, %93 : vector<8x128xi1>, vector<8x128xf32>
    %c5_i32_51 = arith.constant 5 : i32
    %103 = arith.addi %3, %c5_i32_51 : i32
    %104 = vector.broadcast %103 : i32 to vector<8x1xi32>
    %105 = arith.cmpi eq, %54, %104 : vector<8x1xi32>
    %c5 = arith.constant 5 : index
    %c0_52 = arith.constant 0 : index
    %106 = vector.load %arg4[%c5, %c0_52] : memref<10x128xf32, #tpu.memory_space<vmem>>, vector<1x128xf32>
    %107 = vector.shape_cast %105 : vector<8x1xi1> to vector<8x1xi1>
    %108 = vector.broadcast %107 : vector<8x1xi1> to vector<8x128xi1>
    %109 = vector.shape_cast %106 : vector<1x128xf32> to vector<1x128xf32>
    %110 = vector.broadcast %109 : vector<1x128xf32> to vector<8x128xf32>
    %111 = arith.select %108, %110, %102 : vector<8x128xi1>, vector<8x128xf32>
    %c6_i32_53 = arith.constant 6 : i32
    %112 = arith.addi %3, %c6_i32_53 : i32
    %113 = vector.broadcast %112 : i32 to vector<8x1xi32>
    %114 = arith.cmpi eq, %54, %113 : vector<8x1xi32>
    %c6 = arith.constant 6 : index
    %c0_54 = arith.constant 0 : index
    %115 = vector.load %arg4[%c6, %c0_54] : memref<10x128xf32, #tpu.memory_space<vmem>>, vector<1x128xf32>
    %116 = vector.shape_cast %114 : vector<8x1xi1> to vector<8x1xi1>
    %117 = vector.broadcast %116 : vector<8x1xi1> to vector<8x128xi1>
    %118 = vector.shape_cast %115 : vector<1x128xf32> to vector<1x128xf32>
    %119 = vector.broadcast %118 : vector<1x128xf32> to vector<8x128xf32>
    %120 = arith.select %117, %119, %111 : vector<8x128xi1>, vector<8x128xf32>
    %c7_i32_55 = arith.constant 7 : i32
    %121 = arith.addi %3, %c7_i32_55 : i32
    %122 = vector.broadcast %121 : i32 to vector<8x1xi32>
    %123 = arith.cmpi eq, %54, %122 : vector<8x1xi32>
    %c7 = arith.constant 7 : index
    %c0_56 = arith.constant 0 : index
    %124 = vector.load %arg4[%c7, %c0_56] : memref<10x128xf32, #tpu.memory_space<vmem>>, vector<1x128xf32>
    %125 = vector.shape_cast %123 : vector<8x1xi1> to vector<8x1xi1>
    %126 = vector.broadcast %125 : vector<8x1xi1> to vector<8x128xi1>
    %127 = vector.shape_cast %124 : vector<1x128xf32> to vector<1x128xf32>
    %128 = vector.broadcast %127 : vector<1x128xf32> to vector<8x128xf32>
    %129 = arith.select %126, %128, %120 : vector<8x128xi1>, vector<8x128xf32>
    %c8_i32_57 = arith.constant 8 : i32
    %130 = arith.addi %3, %c8_i32_57 : i32
    %131 = vector.broadcast %130 : i32 to vector<8x1xi32>
    %132 = arith.cmpi eq, %54, %131 : vector<8x1xi32>
    %c8 = arith.constant 8 : index
    %c0_58 = arith.constant 0 : index
    %133 = vector.load %arg4[%c8, %c0_58] : memref<10x128xf32, #tpu.memory_space<vmem>>, vector<1x128xf32>
    %134 = vector.shape_cast %132 : vector<8x1xi1> to vector<8x1xi1>
    %135 = vector.broadcast %134 : vector<8x1xi1> to vector<8x128xi1>
    %136 = vector.shape_cast %133 : vector<1x128xf32> to vector<1x128xf32>
    %137 = vector.broadcast %136 : vector<1x128xf32> to vector<8x128xf32>
    %138 = arith.select %135, %137, %129 : vector<8x128xi1>, vector<8x128xf32>
    %c9_i32 = arith.constant 9 : i32
    %139 = arith.addi %3, %c9_i32 : i32
    %140 = vector.broadcast %139 : i32 to vector<8x1xi32>
    %141 = arith.cmpi eq, %54, %140 : vector<8x1xi32>
    %c9 = arith.constant 9 : index
    %c0_59 = arith.constant 0 : index
    %142 = vector.load %arg4[%c9, %c0_59] : memref<10x128xf32, #tpu.memory_space<vmem>>, vector<1x128xf32>
    %143 = vector.shape_cast %141 : vector<8x1xi1> to vector<8x1xi1>
    %144 = vector.broadcast %143 : vector<8x1xi1> to vector<8x128xi1>
    %145 = vector.shape_cast %142 : vector<1x128xf32> to vector<1x128xf32>
    %146 = vector.broadcast %145 : vector<1x128xf32> to vector<8x128xf32>
    %147 = arith.select %144, %146, %138 : vector<8x128xi1>, vector<8x128xf32>
    %148 = vector.shape_cast %147 : vector<8x128xf32> to vector<1x8x128xf32>
    %c0_60 = arith.constant 0 : index
    %c0_61 = arith.constant 0 : index
    %c0_62 = arith.constant 0 : index
    %149 = vector.load %arg6[%c0_60, %c0_61, %c0_62] : memref<1x8x128xf32, #tpu.memory_space<vmem>>, vector<1x8x128xf32>
    tpu.vector_store %arg6[%c0_60, %c0_61, %c0_62], %148 {strides = array<i32>} : memref<1x8x128xf32, #tpu.memory_space<vmem>>, vector<1x8x128xf32>,
    return
  }
  func.func @transform_0(%arg0: i32, %arg1: i32, %arg2: memref<2x24xi32, #tpu.memory_space<smem>>, %arg3: memref<2xi32, #tpu.memory_space<smem>>) -> (i32, i32) {
    %c0_i32 = arith.constant 0 : i32
    %c0_i32_0 = arith.constant 0 : i32
    %c0_i32_1 = arith.constant 0 : i32
    return %c0_i32, %c0_i32_0 : i32, i32
  }
  func.func @transform_2(%arg0: i32, %arg1: i32, %arg2: memref<2x24xi32, #tpu.memory_space<smem>>, %arg3: memref<2xi32, #tpu.memory_space<smem>>) -> (i32, i32, i32) {
    %c0_i32 = arith.constant 0 : i32
    %c0_i32_0 = arith.constant 0 : i32
    return %arg0, %arg1, %c0_i32 : i32, i32, i32
  }
}

</mosaic_0001>

<llo_original>
// kernel: soft_embedding_forward.1
$region0: #{soft_embedding_forward.1}
  #allocation0 [shape = 'u32[]', space=smem, size = 0x4, offset = 0x4, fixed_abs, tag = 'smem constant byte address 0x4 - core index']
  #allocation1 [shape = 'u32[144,128]{1,0:T(1,128)}', space=vmem, size = 0x12000, scoped, tag = 'internal scratch']
  #allocation2 [shape = 'f32[2,8,128]{2,1,0:T(8,128)}', space=vmem, size = 0x2000, scoped, tag = 'scratch operand']
  #allocation3 [shape = 's32[16]{0}', space=sflag, size = 0x40, scoped, tag = 'scratch operand']
  #allocation4 [shape = 's32[1]{0}', space=sflag, size = 0x4, scoped, tag = 'scoped memory for soft_embedding_forward.1']
  #allocation5 [shape = 'u8[1024]{0}', space=smem, size = 0x400, scoped, tag = 'prefetched SMEM operand 0']
  #allocation6 [shape = 'u8[512]{0}', space=smem, size = 0x200, scoped, tag = 'prefetched SMEM operand 1']
  #allocation9 [shape = 's32[]', space=sflag, size = 0x4, offset = 0, fixed_abs, tag = 'sflag constant byte address 0x0 - dummy sync flag']
  #allocation10 [shape = 's32[]', space=sflag, size = 0x4, offset = 0, fixed_abs, tag = 'sflag constant byte address 0x0 - dummy sync flag']
  #allocation11 [shape = 'u32[]', space=smem, size = 0x4, offset = 0x44, fixed_abs, tag = 'smem constant byte address 0x44 - assertion arg 0']
  #allocation12 [shape = 'u32[]', space=smem, size = 0x4, offset = 0x48, fixed_abs, tag = 'smem constant byte address 0x48 - assertion arg 1']
  #allocation13 [shape = 's32[]', space=sflag, size = 0x4, offset = 0, fixed_abs, tag = 'sflag constant byte address 0x0 - dummy sync flag']
  #allocation14 [shape = 's32[]', space=sflag, size = 0x4, offset = 0, fixed_abs, tag = 'sflag constant byte address 0x0 - dummy sync flag']
  #allocation15 [shape = 's32[]', space=sflag, size = 0x4, offset = 0, fixed_abs, tag = 'sflag constant byte address 0x0 - dummy sync flag']
  #allocation16 [shape = 's32[]', space=sflag, size = 0x4, offset = 0, fixed_abs, tag = 'sflag constant byte address 0x0 - dummy sync flag']
  #allocation17 [shape = 's32[]', space=sflag, size = 0x4, offset = 0, fixed_abs, tag = 'sflag constant byte address 0x0 - dummy sync flag']
  #allocation18 [shape = 's32[]', space=sflag, size = 0x4, offset = 0, fixed_abs, tag = 'sflag constant byte address 0x0 - dummy sync flag']
  #allocation19 [shape = 's32[]', space=sflag, size = 0x4, offset = 0, fixed_abs, tag = 'sflag constant byte address 0x0 - dummy sync flag']
  #allocation20 [shape = 's32[]', space=sflag, size = 0x4, offset = 0, fixed_abs, tag = 'sflag constant byte address 0x0 - dummy sync flag']
  #allocation21 [shape = 's32[]', space=sflag, size = 0x4, offset = 0, fixed_abs, tag = 'sflag constant byte address 0x0 - dummy sync flag']
  #allocation22 [shape = 's32[]', space=sflag, size = 0x4, offset = 0, fixed_abs, tag = 'sflag constant byte address 0x0 - dummy sync flag']
  #allocation23 [shape = 's32[]', space=sflag, size = 0x4, offset = 0, fixed_abs, tag = 'sflag constant byte address 0x0 - dummy sync flag']
  #allocation24 [shape = 's32[]', space=sflag, size = 0x4, offset = 0, fixed_abs, tag = 'sflag constant byte address 0x0 - dummy sync flag']
  #allocation25 [shape = 's32[]', space=sflag, size = 0x4, offset = 0, fixed_abs, tag = 'sflag constant byte address 0x0 - dummy sync flag']
  #allocation26 [shape = 's32[]', space=sflag, size = 0x4, offset = 0, fixed_abs, tag = 'sflag constant byte address 0x0 - dummy sync flag']
  #allocation27 [shape = 's32[]', space=sflag, size = 0x4, offset = 0, fixed_abs, tag = 'sflag constant byte address 0x0 - dummy sync flag']
  #allocation28 [shape = 's32[]', space=sflag, size = 0x4, offset = 0, fixed_abs, tag = 'sflag constant byte address 0x0 - dummy sync flag']
  #allocation29 [shape = 's32[]', space=sflag, size = 0x4, offset = 0, fixed_abs, tag = 'sflag constant byte address 0x0 - dummy sync flag']
  #allocation30 [shape = 's32[]', space=sflag, size = 0x4, offset = 0, fixed_abs, tag = 'sflag constant byte address 0x0 - dummy sync flag']
  #allocation31 [shape = 's32[]', space=sflag, size = 0x4, offset = 0, fixed_abs, tag = 'sflag constant byte address 0x0 - dummy sync flag']
  #allocation32 [shape = 's32[]', space=sflag, size = 0x4, offset = 0, fixed_abs, tag = 'sflag constant byte address 0x0 - dummy sync flag']
  #allocation33 [shape = 's32[]', space=sflag, size = 0x4, offset = 0, fixed_abs, tag = 'sflag constant byte address 0x0 - dummy sync flag']
  #allocation34 [shape = 's32[]', space=sflag, size = 0x4, offset = 0, fixed_abs, tag = 'sflag constant byte address 0x0 - dummy sync flag']
  #allocation35 [shape = 's32[]', space=sflag, size = 0x4, offset = 0, fixed_abs, tag = 'sflag constant byte address 0x0 - dummy sync flag']
  #allocation36 [shape = 's32[]', space=sflag, size = 0x4, offset = 0, fixed_abs, tag = 'sflag constant byte address 0x0 - dummy sync flag']
  #allocation37 [shape = 's32[]', space=sflag, size = 0x4, offset = 0, fixed_abs, tag = 'sflag constant byte address 0x0 - dummy sync flag']
  #allocation38 [shape = 's32[]', space=sflag, size = 0x4, offset = 0, fixed_abs, tag = 'sflag constant byte address 0x0 - dummy sync flag']
  #allocation39 [shape = 's32[]', space=sflag, size = 0x4, offset = 0, fixed_abs, tag = 'sflag constant byte address 0x0 - dummy sync flag']
  #allocation40 [shape = 's32[]', space=sflag, size = 0x4, offset = 0, fixed_abs, tag = 'sflag constant byte address 0x0 - dummy sync flag']
  #allocation41 [shape = 's32[]', space=sflag, size = 0x4, offset = 0, fixed_abs, tag = 'sflag constant byte address 0x0 - dummy sync flag']
  #allocation42 [shape = 's32[]', space=sflag, size = 0x4, offset = 0, fixed_abs, tag = 'sflag constant byte address 0x0 - dummy sync flag']
  %s0 = inlined_call_operand.vmem [shape: s32[2,24], index: 0, kind: input, shape index: {}]
  %s1 = inlined_call_operand.vmem [shape: s32[2], index: 1, kind: input, shape index: {}]
  %s2 = inlined_call_operand.hbm [shape: f32[10,128], index: 2, kind: input, shape index: {}]
  %s3 = inlined_call_operand.hbm [shape: f32[50260,128], index: 3, kind: input, shape index: {}]
  %s4 = inlined_call_operand.vmem [shape: f32[2,24,128], index: 4, kind: output, shape index: {}]
  %s5 = sld [smem:[#allocation0]]
  $region113: #{soft_embedding_forward.1} parent=0
    _
  %s7 = ssub.s32 1, %s5
  %s8 = scalar_select 0, %s7, %s5
  %s9 = sshll.u32 %s0, 4
  %s10 = int_to_ptr.vmem [resolvable:$true] %s9
  %12 = dma.vmem_to_smem %s10, 32, [#allocation5], [#allocation4]
  %s13 = sshll.u32 %s1, 4
  %s14 = int_to_ptr.vmem [resolvable:$true] %s13
  %16 = dma.vmem_to_smem %s14, 16, [#allocation6], [#allocation4]
  %17 = dma.done [#allocation4], 48
  %18 = sfence
  $region1: #{soft_embedding_forward.1} parent=0
    #allocation7 [shape = 'u8[8192]{0}', space=vmem, size = 0x2000, scoped, tag = 'input window, operand 2, single buffered']
    #allocation8 [shape = 's32[2]{0}', space=sflag, size = 0x8, scoped, tag = 'scoped memory for soft_embedding_forward.1']
    %19 = vsyncpa [#allocation8], 0
    loop: start=0, step=1, limit=8
    $region2: #{soft_embedding_forward.1} parent=1 // loop_pre_header
      _
    $region3: #{soft_embedding_forward.1} parent=1 // loop_header
      %s21 = sphi 0, %s25
      %p22 = scmp.ge.s32.totalorder %s21, 8
      %s28 = sphi 0, %s40
      %s29 = sphi 0, %s36
      %s30 = sphi 0, %s28
      %s31 = sphi 0, %s29
      %s32 = sphi 0, %s30
      %s33 = sphi 0, %s31
      %s41 = sphi 0, %s41
      %s43 = sphi 0, %s41
      %s44 = sphi 0, %s43
      %s58 = sphi 0, %s44
      %s66 = sphi 0, %s68
      %s69 = sphi 0, %s66
      %s70 = sphi 0, %s69
      %s86 = sphi 0, %s70
    $region4: #{soft_embedding_forward.1} parent=1 // loop_header_branch
      %24 = sbr.rel (%p22) target = $region8
    $region5: #{soft_embedding_forward.1} parent=1 // loop_body
      %s26 = ssub.s32 %s21, 1
      %s27 = ssub.s32 %s21, 2
      %s34 = sadd.s32 1, %s29
      %p35 = scmp.ge.s32.totalorder %s34, 3
      %s36 = scalar_select %p35, 0, %s34
      %s37 = sadd.s32 1, %s28
      %s38 = scalar_select %p35, %s37, %s28
      %p39 = scmp.ge.s32.totalorder %s38, 2
      %s40 = scalar_select %p39, 0, %s38
      %s42 = sadd.s32 %s41, 1
      %p45 = scmp.eq.s32.totalorder %s21, 5
      %p46 = scmp.ne.s32.totalorder %s41, %s43
      %p47 = scmp.eq.s32.totalorder %s21, 0
      %p48 = por %p46, %p47
      %p49 = scmp.ne.s32.totalorder %s41, %s43
      %p50 = scmp.eq.s32.totalorder %s26, 5
      %p51 = por %p49, %p50
      %p52 = scmp.ne.s32.totalorder %s43, %s44
      %p53 = scmp.eq.s32.totalorder %s26, 0
      %p54 = por %p52, %p53
      %p55 = scmp.ne.s32.totalorder %s43, %s44
      %p56 = scmp.eq.s32.totalorder %s27, 5
      %p57 = por %p55, %p56
      %p59 = scmp.ne.s32.totalorder %s44, %s58
      %p60 = scmp.eq.s32.totalorder %s27, 0
      %p61 = por %p59, %p60
      %s62 = ssub.s32 %s28, %s40
      %s63 = ssub.s32 %s29, %s36
      %s64 = sor.u32 %s62, %s63
      %p65 = scmp.eq.s32.totalorder %s64, 0
      %s67 = sadd.s32 %s66, 1
      %s68 = scalar_select %p65, %s66, %s67
      %p71 = pneg %p65
      %p72 = scmp.eq.s32.totalorder %s21, 5
      %p73 = por %p71, %p72
      %p74 = scmp.ne.s32.totalorder %s66, %s69
      %p75 = scmp.eq.s32.totalorder %s21, 0
      %p76 = por %p74, %p75
      %p77 = scmp.ne.s32.totalorder %s66, %s69
      %p78 = scmp.eq.s32.totalorder %s26, 5
      %p79 = por %p77, %p78
      %p80 = scmp.ne.s32.totalorder %s69, %s70
      %p81 = scmp.eq.s32.totalorder %s26, 0
      %p82 = por %p80, %p81
      %p83 = scmp.ne.s32.totalorder %s69, %s70
      %p84 = scmp.eq.s32.totalorder %s27, 5
      %p85 = por %p83, %p84
      %p87 = scmp.ne.s32.totalorder %s70, %s86
      %p88 = scmp.eq.s32.totalorder %s27, 0
      %p89 = por %p87, %p88
      %p90 = scmp.le.s32.totalorder 1, %s21
      %p91 = scmp.lt.s32.totalorder %s21, 7
      %p92 = pnand %p90, %p91
      %p93 = pneg %p92
      // Predicated region
      $region9: #{soft_embedding_forward.1} parent=5 // pred_check
        _
      $region10: #{soft_embedding_forward.1} parent=5 // pred_check_branch
        %95 = sbr.rel (%p92) target = $region12
      $region11: #{soft_embedding_forward.1} parent=5 // pred_region
        %s96 = ssub.s32 %s21, 1
        // Predicated region
        $region13: #{soft_embedding_forward.1} parent=11 // pred_check
          %p97 = pneg %p54
        $region14: #{soft_embedding_forward.1} parent=11 // pred_check_branch
          %99 = sbr.rel (%p97) target = $region16
        $region15: #{soft_embedding_forward.1} parent=11 // pred_region
          %s101 = ssub.s32 256, 256
          %102 = vsyncadd [#allocation8], %s101
          %s103 = sshll.u32 [#allocation7], 4
          %s104 = int_to_ptr.vmem [resolvable:$true] %s103
          %109 = dma.hbm_to_vmem [thread:$0]  %s2, 256, %s104, [#allocation8], 128, 128, 8
        $region16: #{soft_embedding_forward.1} parent=11 // pred_fallthru
          _
      $region12: #{soft_embedding_forward.1} parent=5 // pred_fallthru
        _
      %p110 = scmp.lt.s32.totalorder %s21, 6
      // Predicated region
      $region17: #{soft_embedding_forward.1} parent=5 // pred_check
        %p111 = pneg %p110
      $region18: #{soft_embedding_forward.1} parent=5 // pred_check_branch
        %113 = sbr.rel (%p111) target = $region20
      $region19: #{soft_embedding_forward.1} parent=5 // pred_region
        _
      $region20: #{soft_embedding_forward.1} parent=5 // pred_fallthru
        _
      %p114 = scmp.le.s32.totalorder 1, %s21
      %p115 = scmp.lt.s32.totalorder %s21, 7
      %p116 = pnand %p114, %p115
      %p117 = pneg %p116
      // Predicated region
      $region21: #{soft_embedding_forward.1} parent=5 // pred_check
        _
      $region22: #{soft_embedding_forward.1} parent=5 // pred_check_branch
        %119 = sbr.rel (%p116) target = $region24
      $region23: #{soft_embedding_forward.1} parent=5 // pred_region
        %s120 = ssub.s32 %s21, 1
        // Predicated region
        $region25: #{soft_embedding_forward.1} parent=23 // pred_check
          %p121 = pneg %p54
        $region26: #{soft_embedding_forward.1} parent=23 // pred_check_branch
          %123 = sbr.rel (%p121) target = $region28
        $region27: #{soft_embedding_forward.1} parent=23 // pred_region
          %124 = dma.done [#allocation8], 256
        $region28: #{soft_embedding_forward.1} parent=23 // pred_fallthru
          _
        %p125 = pneg %p54
        %p126 = pneg %p51
        %p127 = pneg %p82
        %p128 = pneg %p79
        %p129 = scmp.lt.s32.totalorder %s30, 1
        %s130 = scalar_select %p129, %s30, 1
        %p131 = scmp.lt.s32.totalorder %s31, 2
        %s132 = scalar_select %p131, %s31, 2
        %s133 = smul.addr %s130, 3
        %s134 = sadd.s32 %s132, %s133
        %s135 = smul.addr %s134, 8
        %s136 = scalar_lea.vmem %s4, %s135
        %p137 = scmp.lt.s32.totalorder %s30, 1
        %s138 = scalar_select %p137, %s30, 1
        %p139 = scmp.lt.s32.totalorder %s31, 2
        %s140 = scalar_select %p139, %s31, 2
        %s141 = smul.addr %s138, 3
        %s142 = sadd.s32 %s140, %s141
        %s143 = smul.addr %s142, 8
        %s144 = scalar_lea.vmem %s4, %s143
        %s145 = sand.u32 %s31, 1
        %s146 = ssub.s32 1, %s145
        %s147 = sld [smem:[#allocation6 + %s30]]
        %p148 = scmp.eq.s32.totalorder %s31, 0
        // Predicated region
        $region29: #{soft_embedding_forward.1} parent=23 // pred_check
          %p149 = pneg %p148
        $region30: #{soft_embedding_forward.1} parent=23 // pred_check_branch
          %151 = sbr.rel (%p149) target = $region32
        $region31: #{soft_embedding_forward.1} parent=23 // pred_region
          %s152 = smul.u32 %s30, 128
          %s153 = sld [smem:[#allocation5 + %s152]]
          %s154 = smul.addr %s153, 16
          %s155 = scalar_lea.hbm %s3, %s154
          // Predicated region
          $region33: #{soft_embedding_forward.1} parent=31 // pred_check
            _
          $region34: #{soft_embedding_forward.1} parent=31 // pred_check_branch
            %157 = sbr.rel target = $region36
          $region35: #{soft_embedding_forward.1} parent=31 // pred_region
            %158 = sst [smem:[#allocation11]] [#allocation10]
            %159 = sst [smem:[#allocation12]] [#allocation9]
          $region36: #{soft_embedding_forward.1} parent=31 // pred_fallthru
            _
          %161 = shalt.err (0)
          %s163 = sshll.u32 [#allocation2], 4
          %s164 = int_to_ptr.vmem [resolvable:$true] %s163
          %166 = dma.hbm_to_vmem [thread:$0]  %s155, 16, %s164, [#allocation3]
          %s167 = sadd.s32 %s152, 1
          %s168 = sld [smem:[#allocation5 + %s167]]
          %s169 = smul.addr %s168, 16
          %s170 = scalar_lea.hbm %s3, %s169
          %s171 = scalar_lea.vmem [#allocation2], 1
          %s172 = scalar_lea.sflag [#allocation3], 1
          // Predicated region
          $region37: #{soft_embedding_forward.1} parent=31 // pred_check
            _
          $region38: #{soft_embedding_forward.1} parent=31 // pred_check_branch
            %174 = sbr.rel target = $region40
          $region39: #{soft_embedding_forward.1} parent=31 // pred_region
            %175 = sst [smem:[#allocation11]] [#allocation14]
            %176 = sst [smem:[#allocation12]] [#allocation13]
          $region40: #{soft_embedding_forward.1} parent=31 // pred_fallthru
            _
          %178 = shalt.err (0)
          %s180 = sshll.u32 %s171, 4
          %s181 = int_to_ptr.vmem [resolvable:$true] %s180
          %183 = dma.hbm_to_vmem [thread:$0]  %s170, 16, %s181, %s172
          %s184 = sadd.s32 %s152, 2
          %s185 = sld [smem:[#allocation5 + %s184]]
          %s186 = smul.addr %s185, 16
          %s187 = scalar_lea.hbm %s3, %s186
          %s188 = scalar_lea.vmem [#allocation2], 2
          %s189 = scalar_lea.sflag [#allocation3], 2
          // Predicated region
          $region41: #{soft_embedding_forward.1} parent=31 // pred_check
            _
          $region42: #{soft_embedding_forward.1} parent=31 // pred_check_branch
            %191 = sbr.rel target = $region44
          $region43: #{soft_embedding_forward.1} parent=31 // pred_region
            %192 = sst [smem:[#allocation11]] [#allocation16]
            %193 = sst [smem:[#allocation12]] [#allocation15]
          $region44: #{soft_embedding_forward.1} parent=31 // pred_fallthru
            _
          %195 = shalt.err (0)
          %s197 = sshll.u32 %s188, 4
          %s198 = int_to_ptr.vmem [resolvable:$true] %s197
          %200 = dma.hbm_to_vmem [thread:$0]  %s187, 16, %s198, %s189
          %s201 = sadd.s32 %s152, 3
          %s202 = sld [smem:[#allocation5 + %s201]]
          %s203 = smul.addr %s202, 16
          %s204 = scalar_lea.hbm %s3, %s203
          %s205 = scalar_lea.vmem [#allocation2], 3
          %s206 = scalar_lea.sflag [#allocation3], 3
          // Predicated region
          $region45: #{soft_embedding_forward.1} parent=31 // pred_check
            _
          $region46: #{soft_embedding_forward.1} parent=31 // pred_check_branch
            %208 = sbr.rel target = $region48
          $region47: #{soft_embedding_forward.1} parent=31 // pred_region
            %209 = sst [smem:[#allocation11]] [#allocation18]
            %210 = sst [smem:[#allocation12]] [#allocation17]
          $region48: #{soft_embedding_forward.1} parent=31 // pred_fallthru
            _
          %212 = shalt.err (0)
          %s214 = sshll.u32 %s205, 4
          %s215 = int_to_ptr.vmem [resolvable:$true] %s214
          %217 = dma.hbm_to_vmem [thread:$0]  %s204, 16, %s215, %s206
          %s218 = sadd.s32 %s152, 4
          %s219 = sld [smem:[#allocation5 + %s218]]
          %s220 = smul.addr %s219, 16
          %s221 = scalar_lea.hbm %s3, %s220
          %s222 = scalar_lea.vmem [#allocation2], 4
          %s223 = scalar_lea.sflag [#allocation3], 4
          // Predicated region
          $region49: #{soft_embedding_forward.1} parent=31 // pred_check
            _
          $region50: #{soft_embedding_forward.1} parent=31 // pred_check_branch
            %225 = sbr.rel target = $region52
          $region51: #{soft_embedding_forward.1} parent=31 // pred_region
            %226 = sst [smem:[#allocation11]] [#allocation20]
            %227 = sst [smem:[#allocation12]] [#allocation19]
          $region52: #{soft_embedding_forward.1} parent=31 // pred_fallthru
            _
          %229 = shalt.err (0)
          %s231 = sshll.u32 %s222, 4
          %s232 = int_to_ptr.vmem [resolvable:$true] %s231
          %234 = dma.hbm_to_vmem [thread:$0]  %s221, 16, %s232, %s223
          %s235 = sadd.s32 %s152, 5
          %s236 = sld [smem:[#allocation5 + %s235]]
          %s237 = smul.addr %s236, 16
          %s238 = scalar_lea.hbm %s3, %s237
          %s239 = scalar_lea.vmem [#allocation2], 5
          %s240 = scalar_lea.sflag [#allocation3], 5
          // Predicated region
          $region53: #{soft_embedding_forward.1} parent=31 // pred_check
            _
          $region54: #{soft_embedding_forward.1} parent=31 // pred_check_branch
            %242 = sbr.rel target = $region56
          $region55: #{soft_embedding_forward.1} parent=31 // pred_region
            %243 = sst [smem:[#allocation11]] [#allocation22]
            %244 = sst [smem:[#allocation12]] [#allocation21]
          $region56: #{soft_embedding_forward.1} parent=31 // pred_fallthru
            _
          %246 = shalt.err (0)
          %s248 = sshll.u32 %s239, 4
          %s249 = int_to_ptr.vmem [resolvable:$true] %s248
          %251 = dma.hbm_to_vmem [thread:$0]  %s238, 16, %s249, %s240
          %s252 = sadd.s32 %s152, 6
          %s253 = sld [smem:[#allocation5 + %s252]]
          %s254 = smul.addr %s253, 16
          %s255 = scalar_lea.hbm %s3, %s254
          %s256 = scalar_lea.vmem [#allocation2], 6
          %s257 = scalar_lea.sflag [#allocation3], 6
          // Predicated region
          $region57: #{soft_embedding_forward.1} parent=31 // pred_check
            _
          $region58: #{soft_embedding_forward.1} parent=31 // pred_check_branch
            %259 = sbr.rel target = $region60
          $region59: #{soft_embedding_forward.1} parent=31 // pred_region
            %260 = sst [smem:[#allocation11]] [#allocation24]
            %261 = sst [smem:[#allocation12]] [#allocation23]
          $region60: #{soft_embedding_forward.1} parent=31 // pred_fallthru
            _
          %263 = shalt.err (0)
          %s265 = sshll.u32 %s256, 4
          %s266 = int_to_ptr.vmem [resolvable:$true] %s265
          %268 = dma.hbm_to_vmem [thread:$0]  %s255, 16, %s266, %s257
          %s269 = sadd.s32 %s152, 7
          %s270 = sld [smem:[#allocation5 + %s269]]
          %s271 = smul.addr %s270, 16
          %s272 = scalar_lea.hbm %s3, %s271
          %s273 = scalar_lea.vmem [#allocation2], 7
          %s274 = scalar_lea.sflag [#allocation3], 7
          // Predicated region
          $region61: #{soft_embedding_forward.1} parent=31 // pred_check
            _
          $region62: #{soft_embedding_forward.1} parent=31 // pred_check_branch
            %276 = sbr.rel target = $region64
          $region63: #{soft_embedding_forward.1} parent=31 // pred_region
            %277 = sst [smem:[#allocation11]] [#allocation26]
            %278 = sst [smem:[#allocation12]] [#allocation25]
          $region64: #{soft_embedding_forward.1} parent=31 // pred_fallthru
            _
          %280 = shalt.err (0)
          %s282 = sshll.u32 %s273, 4
          %s283 = int_to_ptr.vmem [resolvable:$true] %s282
          %285 = dma.hbm_to_vmem [thread:$0]  %s272, 16, %s283, %s274
        $region32: #{soft_embedding_forward.1} parent=23 // pred_fallthru
          _
        %s286 = sadd.s32 %s31, 1
        %p287 = scmp.lt.s32.totalorder %s286, 3
        // Predicated region
        $region65: #{soft_embedding_forward.1} parent=23 // pred_check
          %p288 = pneg %p287
        $region66: #{soft_embedding_forward.1} parent=23 // pred_check_branch
          %290 = sbr.rel (%p288) target = $region68
        $region67: #{soft_embedding_forward.1} parent=23 // pred_region
          %s291 = smul.u32 %s286, 8
          %s292 = sshra.s32 %s291, 7
          %s293 = sand.u32 %s291, 127
          %s294 = sadd.s32 %s292, %s30
          %s295 = smul.u32 %s294, 128
          %s296 = sshra.s32 %s291, 7
          %s297 = sand.u32 %s291, 127
          %s298 = sadd.s32 %s295, %s297
          %s299 = sld [smem:[#allocation5 + %s298]]
          %s300 = smul.addr %s299, 16
          %s301 = scalar_lea.hbm %s3, %s300
          %s302 = smul.u32 %s146, 8
          %s303 = scalar_lea.vmem [#allocation2], %s302
          %s304 = scalar_lea.sflag [#allocation3], %s302
          // Predicated region
          $region69: #{soft_embedding_forward.1} parent=67 // pred_check
            _
          $region70: #{soft_embedding_forward.1} parent=67 // pred_check_branch
            %306 = sbr.rel target = $region72
          $region71: #{soft_embedding_forward.1} parent=67 // pred_region
            %307 = sst [smem:[#allocation11]] [#allocation28]
            %308 = sst [smem:[#allocation12]] [#allocation27]
          $region72: #{soft_embedding_forward.1} parent=67 // pred_fallthru
            _
          %310 = shalt.err (0)
          %s312 = sshll.u32 %s303, 4
          %s313 = int_to_ptr.vmem [resolvable:$true] %s312
          %315 = dma.hbm_to_vmem [thread:$0]  %s301, 16, %s313, %s304
          %s316 = sadd.s32 %s291, 1
          %s317 = sshra.s32 %s316, 7
          %s318 = sand.u32 %s316, 127
          %s319 = sadd.s32 %s317, %s30
          %s320 = smul.u32 %s319, 128
          %s321 = sshra.s32 %s316, 7
          %s322 = sand.u32 %s316, 127
          %s323 = sadd.s32 %s320, %s322
          %s324 = sld [smem:[#allocation5 + %s323]]
          %s325 = smul.addr %s324, 16
          %s326 = scalar_lea.hbm %s3, %s325
          %s327 = sadd.s32 1, %s302
          %s328 = scalar_lea.vmem [#allocation2], %s327
          %s329 = scalar_lea.sflag [#allocation3], %s327
          // Predicated region
          $region73: #{soft_embedding_forward.1} parent=67 // pred_check
            _
          $region74: #{soft_embedding_forward.1} parent=67 // pred_check_branch
            %331 = sbr.rel target = $region76
          $region75: #{soft_embedding_forward.1} parent=67 // pred_region
            %332 = sst [smem:[#allocation11]] [#allocation30]
            %333 = sst [smem:[#allocation12]] [#allocation29]
          $region76: #{soft_embedding_forward.1} parent=67 // pred_fallthru
            _
          %335 = shalt.err (0)
          %s337 = sshll.u32 %s328, 4
          %s338 = int_to_ptr.vmem [resolvable:$true] %s337
          %340 = dma.hbm_to_vmem [thread:$0]  %s326, 16, %s338, %s329
          %s341 = sadd.s32 %s291, 2
          %s342 = sshra.s32 %s341, 7
          %s343 = sand.u32 %s341, 127
          %s344 = sadd.s32 %s342, %s30
          %s345 = smul.u32 %s344, 128
          %s346 = sshra.s32 %s341, 7
          %s347 = sand.u32 %s341, 127
          %s348 = sadd.s32 %s345, %s347
          %s349 = sld [smem:[#allocation5 + %s348]]
          %s350 = smul.addr %s349, 16
          %s351 = scalar_lea.hbm %s3, %s350
          %s352 = sadd.s32 2, %s302
          %s353 = scalar_lea.vmem [#allocation2], %s352
          %s354 = scalar_lea.sflag [#allocation3], %s352
          // Predicated region
          $region77: #{soft_embedding_forward.1} parent=67 // pred_check
            _
          $region78: #{soft_embedding_forward.1} parent=67 // pred_check_branch
            %356 = sbr.rel target = $region80
          $region79: #{soft_embedding_forward.1} parent=67 // pred_region
            %357 = sst [smem:[#allocation11]] [#allocation32]
            %358 = sst [smem:[#allocation12]] [#allocation31]
          $region80: #{soft_embedding_forward.1} parent=67 // pred_fallthru
            _
          %360 = shalt.err (0)
          %s362 = sshll.u32 %s353, 4
          %s363 = int_to_ptr.vmem [resolvable:$true] %s362
          %365 = dma.hbm_to_vmem [thread:$0]  %s351, 16, %s363, %s354
          %s366 = sadd.s32 %s291, 3
          %s367 = sshra.s32 %s366, 7
          %s368 = sand.u32 %s366, 127
          %s369 = sadd.s32 %s367, %s30
          %s370 = smul.u32 %s369, 128
          %s371 = sshra.s32 %s366, 7
          %s372 = sand.u32 %s366, 127
          %s373 = sadd.s32 %s370, %s372
          %s374 = sld [smem:[#allocation5 + %s373]]
          %s375 = smul.addr %s374, 16
          %s376 = scalar_lea.hbm %s3, %s375
          %s377 = sadd.s32 3, %s302
          %s378 = scalar_lea.vmem [#allocation2], %s377
          %s379 = scalar_lea.sflag [#allocation3], %s377
          // Predicated region
          $region81: #{soft_embedding_forward.1} parent=67 // pred_check
            _
          $region82: #{soft_embedding_forward.1} parent=67 // pred_check_branch
            %381 = sbr.rel target = $region84
          $region83: #{soft_embedding_forward.1} parent=67 // pred_region
            %382 = sst [smem:[#allocation11]] [#allocation34]
            %383 = sst [smem:[#allocation12]] [#allocation33]
          $region84: #{soft_embedding_forward.1} parent=67 // pred_fallthru
            _
          %385 = shalt.err (0)
          %s387 = sshll.u32 %s378, 4
          %s388 = int_to_ptr.vmem [resolvable:$true] %s387
          %390 = dma.hbm_to_vmem [thread:$0]  %s376, 16, %s388, %s379
          %s391 = sadd.s32 %s291, 4
          %s392 = sshra.s32 %s391, 7
          %s393 = sand.u32 %s391, 127
          %s394 = sadd.s32 %s392, %s30
          %s395 = smul.u32 %s394, 128
          %s396 = sshra.s32 %s391, 7
          %s397 = sand.u32 %s391, 127
          %s398 = sadd.s32 %s395, %s397
          %s399 = sld [smem:[#allocation5 + %s398]]
          %s400 = smul.addr %s399, 16
          %s401 = scalar_lea.hbm %s3, %s400
          %s402 = sadd.s32 4, %s302
          %s403 = scalar_lea.vmem [#allocation2], %s402
          %s404 = scalar_lea.sflag [#allocation3], %s402
          // Predicated region
          $region85: #{soft_embedding_forward.1} parent=67 // pred_check
            _
          $region86: #{soft_embedding_forward.1} parent=67 // pred_check_branch
            %406 = sbr.rel target = $region88
          $region87: #{soft_embedding_forward.1} parent=67 // pred_region
            %407 = sst [smem:[#allocation11]] [#allocation36]
            %408 = sst [smem:[#allocation12]] [#allocation35]
          $region88: #{soft_embedding_forward.1} parent=67 // pred_fallthru
            _
          %410 = shalt.err (0)
          %s412 = sshll.u32 %s403, 4
          %s413 = int_to_ptr.vmem [resolvable:$true] %s412
          %415 = dma.hbm_to_vmem [thread:$0]  %s401, 16, %s413, %s404
          %s416 = sadd.s32 %s291, 5
          %s417 = sshra.s32 %s416, 7
          %s418 = sand.u32 %s416, 127
          %s419 = sadd.s32 %s417, %s30
          %s420 = smul.u32 %s419, 128
          %s421 = sshra.s32 %s416, 7
          %s422 = sand.u32 %s416, 127
          %s423 = sadd.s32 %s420, %s422
          %s424 = sld [smem:[#allocation5 + %s423]]
          %s425 = smul.addr %s424, 16
          %s426 = scalar_lea.hbm %s3, %s425
          %s427 = sadd.s32 5, %s302
          %s428 = scalar_lea.vmem [#allocation2], %s427
          %s429 = scalar_lea.sflag [#allocation3], %s427
          // Predicated region
          $region89: #{soft_embedding_forward.1} parent=67 // pred_check
            _
          $region90: #{soft_embedding_forward.1} parent=67 // pred_check_branch
            %431 = sbr.rel target = $region92
          $region91: #{soft_embedding_forward.1} parent=67 // pred_region
            %432 = sst [smem:[#allocation11]] [#allocation38]
            %433 = sst [smem:[#allocation12]] [#allocation37]
          $region92: #{soft_embedding_forward.1} parent=67 // pred_fallthru
            _
          %435 = shalt.err (0)
          %s437 = sshll.u32 %s428, 4
          %s438 = int_to_ptr.vmem [resolvable:$true] %s437
          %440 = dma.hbm_to_vmem [thread:$0]  %s426, 16, %s438, %s429
          %s441 = sadd.s32 %s291, 6
          %s442 = sshra.s32 %s441, 7
          %s443 = sand.u32 %s441, 127
          %s444 = sadd.s32 %s442, %s30
          %s445 = smul.u32 %s444, 128
          %s446 = sshra.s32 %s441, 7
          %s447 = sand.u32 %s441, 127
          %s448 = sadd.s32 %s445, %s447
          %s449 = sld [smem:[#allocation5 + %s448]]
          %s450 = smul.addr %s449, 16
          %s451 = scalar_lea.hbm %s3, %s450
          %s452 = sadd.s32 6, %s302
          %s453 = scalar_lea.vmem [#allocation2], %s452
          %s454 = scalar_lea.sflag [#allocation3], %s452
          // Predicated region
          $region93: #{soft_embedding_forward.1} parent=67 // pred_check
            _
          $region94: #{soft_embedding_forward.1} parent=67 // pred_check_branch
            %456 = sbr.rel target = $region96
          $region95: #{soft_embedding_forward.1} parent=67 // pred_region
            %457 = sst [smem:[#allocation11]] [#allocation40]
            %458 = sst [smem:[#allocation12]] [#allocation39]
          $region96: #{soft_embedding_forward.1} parent=67 // pred_fallthru
            _
          %460 = shalt.err (0)
          %s462 = sshll.u32 %s453, 4
          %s463 = int_to_ptr.vmem [resolvable:$true] %s462
          %465 = dma.hbm_to_vmem [thread:$0]  %s451, 16, %s463, %s454
          %s466 = sadd.s32 %s291, 7
          %s467 = sshra.s32 %s466, 7
          %s468 = sand.u32 %s466, 127
          %s469 = sadd.s32 %s467, %s30
          %s470 = smul.u32 %s469, 128
          %s471 = sshra.s32 %s466, 7
          %s472 = sand.u32 %s466, 127
          %s473 = sadd.s32 %s470, %s472
          %s474 = sld [smem:[#allocation5 + %s473]]
          %s475 = smul.addr %s474, 16
          %s476 = scalar_lea.hbm %s3, %s475
          %s477 = sadd.s32 7, %s302
          %s478 = scalar_lea.vmem [#allocation2], %s477
          %s479 = scalar_lea.sflag [#allocation3], %s477
          // Predicated region
          $region97: #{soft_embedding_forward.1} parent=67 // pred_check
            _
          $region98: #{soft_embedding_forward.1} parent=67 // pred_check_branch
            %481 = sbr.rel target = $region100
          $region99: #{soft_embedding_forward.1} parent=67 // pred_region
            %482 = sst [smem:[#allocation11]] [#allocation42]
            %483 = sst [smem:[#allocation12]] [#allocation41]
          $region100: #{soft_embedding_forward.1} parent=67 // pred_fallthru
            _
          %485 = shalt.err (0)
          %s487 = sshll.u32 %s478, 4
          %s488 = int_to_ptr.vmem [resolvable:$true] %s487
          %490 = dma.hbm_to_vmem [thread:$0]  %s476, 16, %s488, %s479
        $region68: #{soft_embedding_forward.1} parent=23 // pred_fallthru
          _
        %s491 = smul.u32 %s145, 8
        %s492 = scalar_lea.sflag [#allocation3], %s491
        %s493 = smul.u32 1, 1
        %s494 = sshll.u32 %s493, 4
        %495 = dma.done %s492, %s494
        %s496 = sadd.s32 1, %s491
        %s497 = scalar_lea.sflag [#allocation3], %s496
        %s498 = sshll.u32 %s493, 4
        %499 = dma.done %s497, %s498
        %s500 = sadd.s32 2, %s491
        %s501 = scalar_lea.sflag [#allocation3], %s500
        %s502 = sshll.u32 %s493, 4
        %503 = dma.done %s501, %s502
        %s504 = sadd.s32 3, %s491
        %s505 = scalar_lea.sflag [#allocation3], %s504
        %s506 = sshll.u32 %s493, 4
        %507 = dma.done %s505, %s506
        %s508 = sadd.s32 4, %s491
        %s509 = scalar_lea.sflag [#allocation3], %s508
        %s510 = sshll.u32 %s493, 4
        %511 = dma.done %s509, %s510
        %s512 = sadd.s32 5, %s491
        %s513 = scalar_lea.sflag [#allocation3], %s512
        %s514 = sshll.u32 %s493, 4
        %515 = dma.done %s513, %s514
        %s516 = sadd.s32 6, %s491
        %s517 = scalar_lea.sflag [#allocation3], %s516
        %s518 = sshll.u32 %s493, 4
        %519 = dma.done %s517, %s518
        %s520 = sadd.s32 7, %s491
        %s521 = scalar_lea.sflag [#allocation3], %s520
        %s522 = sshll.u32 %s493, 4
        %523 = dma.done %s521, %s522
        %s524 = smul.u32 %s31, 8
        %v525 = vlaneseq
        %v526 = vshrl.u32 %v525, 7
        %v527 = vstv %s524
        %v528 = vadd.s32 %v527, %v526
        %s529 = scalar_lea.vmem [#allocation2], %s491
        %v530 = vld [vmem:[%s529] sm:$0xff]
        %v531 = vstv %s147
        %vm532 = vcmp.eq.s32.totalorder %v528, %v531
        %v533 = vld [vmem:[#allocation7] sm:$0x1]
        %v534 = vsel %vm532, 1, 0
        %vm535 = vcmp.eq.s32.totalorder %v534, 1
        %v536 = vlaneseq
        %v537 = vshrl.u32 %v536, 7
        %v538 = vsub.s32 0, %v537
        %v539 = vrot.slane %v533, %v538
        %v540 = vsel %vm535, %v539, %v530
        %s541 = sadd.s32 %s147, 1
        %v542 = vstv %s541
        %vm543 = vcmp.eq.s32.totalorder %v528, %v542
        %v544 = vld [vmem:[#allocation7 + $0x1] sm:$0x1]
        %v545 = vsel %vm543, 1, 0
        %vm546 = vcmp.eq.s32.totalorder %v545, 1
        %v547 = vlaneseq
        %v548 = vshrl.u32 %v547, 7
        %v549 = vsub.s32 0, %v548
        %v550 = vrot.slane %v544, %v549
        %v551 = vsel %vm546, %v550, %v540
        %s552 = sadd.s32 %s147, 2
        %v553 = vstv %s552
        %vm554 = vcmp.eq.s32.totalorder %v528, %v553
        %v555 = vld [vmem:[#allocation7 + $0x2] sm:$0x1]
        %v556 = vsel %vm554, 1, 0
        %vm557 = vcmp.eq.s32.totalorder %v556, 1
        %v558 = vlaneseq
        %v559 = vshrl.u32 %v558, 7
        %v560 = vsub.s32 0, %v559
        %v561 = vrot.slane %v555, %v560
        %v562 = vsel %vm557, %v561, %v551
        %s563 = sadd.s32 %s147, 3
        %v564 = vstv %s563
        %vm565 = vcmp.eq.s32.totalorder %v528, %v564
        %v566 = vld [vmem:[#allocation7 + $0x3] sm:$0x1]
        %v567 = vsel %vm565, 1, 0
        %vm568 = vcmp.eq.s32.totalorder %v567, 1
        %v569 = vlaneseq
        %v570 = vshrl.u32 %v569, 7
        %v571 = vsub.s32 0, %v570
        %v572 = vrot.slane %v566, %v571
        %v573 = vsel %vm568, %v572, %v562
        %s574 = sadd.s32 %s147, 4
        %v575 = vstv %s574
        %vm576 = vcmp.eq.s32.totalorder %v528, %v575
        %v577 = vld [vmem:[#allocation7 + $0x4] sm:$0x1]
        %v578 = vsel %vm576, 1, 0
        %vm579 = vcmp.eq.s32.totalorder %v578, 1
        %v580 = vlaneseq
        %v581 = vshrl.u32 %v580, 7
        %v582 = vsub.s32 0, %v581
        %v583 = vrot.slane %v577, %v582
        %v584 = vsel %vm579, %v583, %v573
        %s585 = sadd.s32 %s147, 5
        %v586 = vstv %s585
        %vm587 = vcmp.eq.s32.totalorder %v528, %v586
        %v588 = vld [vmem:[#allocation7 + $0x5] sm:$0x1]
        %v589 = vsel %vm587, 1, 0
        %vm590 = vcmp.eq.s32.totalorder %v589, 1
        %v591 = vlaneseq
        %v592 = vshrl.u32 %v591, 7
        %v593 = vsub.s32 0, %v592
        %v594 = vrot.slane %v588, %v593
        %v595 = vsel %vm590, %v594, %v584
        %s596 = sadd.s32 %s147, 6
        %v597 = vstv %s596
        %vm598 = vcmp.eq.s32.totalorder %v528, %v597
        %v599 = vld [vmem:[#allocation7 + $0x6] sm:$0x1]
        %v600 = vsel %vm598, 1, 0
        %vm601 = vcmp.eq.s32.totalorder %v600, 1
        %v602 = vlaneseq
        %v603 = vshrl.u32 %v602, 7
        %v604 = vsub.s32 0, %v603
        %v605 = vrot.slane %v599, %v604
        %v606 = vsel %vm601, %v605, %v595
        %s607 = sadd.s32 %s147, 7
        %v608 = vstv %s607
        %vm609 = vcmp.eq.s32.totalorder %v528, %v608
        %v610 = vld [vmem:[#allocation7 + $0x7] sm:$0x1]
        %v611 = vsel %vm609, 1, 0
        %vm612 = vcmp.eq.s32.totalorder %v611, 1
        %v613 = vlaneseq
        %v614 = vshrl.u32 %v613, 7
        %v615 = vsub.s32 0, %v614
        %v616 = vrot.slane %v610, %v615
        %v617 = vsel %vm612, %v616, %v606
        %s618 = sadd.s32 %s147, 8
        %v619 = vstv %s618
        %vm620 = vcmp.eq.s32.totalorder %v528, %v619
        %v621 = vld [vmem:[#allocation7 + $0x8] sm:$0x1]
        %v622 = vsel %vm620, 1, 0
        %vm623 = vcmp.eq.s32.totalorder %v622, 1
        %v624 = vlaneseq
        %v625 = vshrl.u32 %v624, 7
        %v626 = vsub.s32 0, %v625
        %v627 = vrot.slane %v621, %v626
        %v628 = vsel %vm623, %v627, %v617
        %s629 = sadd.s32 %s147, 9
        %v630 = vstv %s629
        %vm631 = vcmp.eq.s32.totalorder %v528, %v630
        %v632 = vld [vmem:[#allocation7 + $0x9] sm:$0x1]
        %v633 = vsel %vm631, 1, 0
        %vm634 = vcmp.eq.s32.totalorder %v633, 1
        %v635 = vlaneseq
        %v636 = vshrl.u32 %v635, 7
        %v637 = vsub.s32 0, %v636
        %v638 = vrot.slane %v632, %v637
        %v639 = vsel %vm634, %v638, %v628
        %640 = vst [vmem:[%s144] sm:$0xff] %v639
        %p641 = scmp.lt.s32.totalorder %s30, 1
        %s642 = scalar_select %p641, %s30, 1
        %p643 = scmp.lt.s32.totalorder %s31, 2
        %s644 = scalar_select %p643, %s31, 2
        %s645 = smul.addr %s642, 3
        %s646 = sadd.s32 %s644, %s645
        %s647 = smul.addr %s646, 8
        %s648 = scalar_lea.vmem %s4, %s647
        // Predicated region
        $region101: #{soft_embedding_forward.1} parent=23 // pred_check
          %p649 = pneg %p79
        $region102: #{soft_embedding_forward.1} parent=23 // pred_check_branch
          %651 = sbr.rel (%p649) target = $region104
        $region103: #{soft_embedding_forward.1} parent=23 // pred_region
          _
        $region104: #{soft_embedding_forward.1} parent=23 // pred_fallthru
          _
      $region24: #{soft_embedding_forward.1} parent=5 // pred_fallthru
        _
      %p652 = scmp.le.s32.totalorder 2, %s21
      // Predicated region
      $region105: #{soft_embedding_forward.1} parent=5 // pred_check
        %p653 = pneg %p652
      $region106: #{soft_embedding_forward.1} parent=5 // pred_check_branch
        %655 = sbr.rel (%p653) target = $region108
      $region107: #{soft_embedding_forward.1} parent=5 // pred_region
        %s656 = ssub.s32 %s21, 2
        // Predicated region
        $region109: #{soft_embedding_forward.1} parent=107 // pred_check
          %p657 = pneg %p85
        $region110: #{soft_embedding_forward.1} parent=107 // pred_check_branch
          %659 = sbr.rel (%p657) target = $region112
        $region111: #{soft_embedding_forward.1} parent=107 // pred_region
          %p660 = scmp.lt.s32.totalorder %s32, 1
          %s661 = scalar_select %p660, %s32, 1
          %p662 = scmp.lt.s32.totalorder %s33, 2
          %s663 = scalar_select %p662, %s33, 2
          %s664 = smul.addr %s661, 3
          %s665 = sadd.s32 %s663, %s664
          %s666 = smul.addr %s665, 8
          %s667 = scalar_lea.vmem %s4, %s666
        $region112: #{soft_embedding_forward.1} parent=107 // pred_fallthru
          _
      $region108: #{soft_embedding_forward.1} parent=5 // pred_fallthru
        _
    $region6: #{soft_embedding_forward.1} parent=1 // loop_footer
      %s25 = sadd.s32 1, %s21
    $region7: #{soft_embedding_forward.1} parent=1 // loop_footer_branch
      %20 = sbr.rel target = $region3
    $region8: #{soft_embedding_forward.1} parent=1 // loop_exit
      _
    %668 = vsyncpa [#allocation8], 1
    %s669 = scalar_lea.sflag [#allocation8], 1
    %670 = vsyncpa %s669, 1
  %671 = vsyncmov [#allocation3]
  %s672 = vpop.sfrf %671
  %p673 = scmp.eq.s32.totalorder %s672, 0
  %p674 = pneg %p673
  %676 = shalt.err (%p674)
  %s677 = scalar_lea.sflag [#allocation3], 1
  %678 = vsyncmov %s677
  %s679 = vpop.sfrf %678
  %p680 = scmp.eq.s32.totalorder %s679, 0
  %p681 = pneg %p680
  %683 = shalt.err (%p681)
  %s684 = scalar_lea.sflag [#allocation3], 2
  %685 = vsyncmov %s684
  %s686 = vpop.sfrf %685
  %p687 = scmp.eq.s32.totalorder %s686, 0
  %p688 = pneg %p687
  %690 = shalt.err (%p688)
  %s691 = scalar_lea.sflag [#allocation3], 3
  %692 = vsyncmov %s691
  %s693 = vpop.sfrf %692
  %p694 = scmp.eq.s32.totalorder %s693, 0
  %p695 = pneg %p694
  %697 = shalt.err (%p695)
  %s698 = scalar_lea.sflag [#allocation3], 4
  %699 = vsyncmov %s698
  %s700 = vpop.sfrf %699
  %p701 = scmp.eq.s32.totalorder %s700, 0
  %p702 = pneg %p701
  %704 = shalt.err (%p702)
  %s705 = scalar_lea.sflag [#allocation3], 5
  %706 = vsyncmov %s705
  %s707 = vpop.sfrf %706
  %p708 = scmp.eq.s32.totalorder %s707, 0
  %p709 = pneg %p708
  %711 = shalt.err (%p709)
  %s712 = scalar_lea.sflag [#allocation3], 6
  %713 = vsyncmov %s712
  %s714 = vpop.sfrf %713
  %p715 = scmp.eq.s32.totalorder %s714, 0
  %p716 = pneg %p715
  %718 = shalt.err (%p716)
  %s719 = scalar_lea.sflag [#allocation3], 7
  %720 = vsyncmov %s719
  %s721 = vpop.sfrf %720
  %p722 = scmp.eq.s32.totalorder %s721, 0
  %p723 = pneg %p722
  %725 = shalt.err (%p723)
  %s726 = scalar_lea.sflag [#allocation3], 8
  %727 = vsyncmov %s726
  %s728 = vpop.sfrf %727
  %p729 = scmp.eq.s32.totalorder %s728, 0
  %p730 = pneg %p729
  %732 = shalt.err (%p730)
  %s733 = scalar_lea.sflag [#allocation3], 9
  %734 = vsyncmov %s733
  %s735 = vpop.sfrf %734
  %p736 = scmp.eq.s32.totalorder %s735, 0
  %p737 = pneg %p736
  %739 = shalt.err (%p737)
  %s740 = scalar_lea.sflag [#allocation3], 10
  %741 = vsyncmov %s740
  %s742 = vpop.sfrf %741
  %p743 = scmp.eq.s32.totalorder %s742, 0
  %p744 = pneg %p743
  %746 = shalt.err (%p744)
  %s747 = scalar_lea.sflag [#allocation3], 11
  %748 = vsyncmov %s747
  %s749 = vpop.sfrf %748
  %p750 = scmp.eq.s32.totalorder %s749, 0
  %p751 = pneg %p750
  %753 = shalt.err (%p751)
  %s754 = scalar_lea.sflag [#allocation3], 12
  %755 = vsyncmov %s754
  %s756 = vpop.sfrf %755
  %p757 = scmp.eq.s32.totalorder %s756, 0
  %p758 = pneg %p757
  %760 = shalt.err (%p758)
  %s761 = scalar_lea.sflag [#allocation3], 13
  %762 = vsyncmov %s761
  %s763 = vpop.sfrf %762
  %p764 = scmp.eq.s32.totalorder %s763, 0
  %p765 = pneg %p764
  %767 = shalt.err (%p765)
  %s768 = scalar_lea.sflag [#allocation3], 14
  %769 = vsyncmov %s768
  %s770 = vpop.sfrf %769
  %p771 = scmp.eq.s32.totalorder %s770, 0
  %p772 = pneg %p771
  %774 = shalt.err (%p772)
  %s775 = scalar_lea.sflag [#allocation3], 15
  %776 = vsyncmov %s775
  %s777 = vpop.sfrf %776
  %p778 = scmp.eq.s32.totalorder %s777, 0
  %p779 = pneg %p778
  %781 = shalt.err (%p779)

</llo_original>
